<compile_context>
chip_gen: v7x
topology: tpu7x:2x2x1
jax: 0.10.0
libtpu: 0.0.40
codegen_flags: <defaults>
</compile_context>

<pallas_src>
import functools

import jax
import jax.numpy as jnp
from jax.experimental import pallas as pl
from jax.experimental.pallas import tpu as pltpu

# ----- small-BERT config (scaled-down bert-base-uncased) -----
VOCAB = 100
TYPE_VOCAB = 2
MAX_POS = 16
HIDDEN = 32
N_HEADS = 2
HEAD_DIM = HIDDEN // N_HEADS
N_LAYERS = 2
INTERMEDIATE = 64
NUM_LABELS = 2
NUM_LABELS_PAD = 128          # lane-dense classifier width; sliced to NUM_LABELS outside
LN_EPS = 1e-12


# ---------------- in-kernel helpers (all f32 VPU/EUP math) ----------------

def _layer_norm(x, g, b):
    mu = jnp.mean(x, axis=-1, keepdims=True)
    var = jnp.mean((x - mu) ** 2, axis=-1, keepdims=True)
    return (x - mu) * jax.lax.rsqrt(var + LN_EPS) * g + b


def _gelu(x):
    # TODO(synk): HF BERT uses exact erf-GELU; tanh approximation kept for a
    # guaranteed Mosaic lowering (EUP tanh).
    c = 0.7978845608028654  # sqrt(2/pi)
    return 0.5 * x * (1.0 + jnp.tanh(c * (x + 0.044715 * x * x * x)))


# ---------------- the single fused Pallas kernel ----------------

def fused_bert_kernel(emb_ref, mask_ref, emb_g_ref, emb_b_ref,
                      wqkv_ref, bqkv_ref, wo_ref, bo_ref, g1_ref, b1_ref,
                      wi_ref, bi_ref, wo2_ref, bo2_ref, g2_ref, b2_ref,
                      wp_ref, bp_ref, wc_ref, bc_ref,
                      *rest, n_layers, n_heads, head_dim, compute_loss):
    if compute_loss:
        labels_ref, pw_ref, logits_ref, loss_ref = rest
    else:
        (logits_ref,) = rest

    B, S, H = emb_ref.shape
    BS = B * S

    # Embeddings were summed in the jit wrapper (one (B,S,H) DMA instead of three);
    # only the embedding LayerNorm remains here.
    x = _layer_norm(emb_ref[...].reshape(BS, H), emb_g_ref[...], emb_b_ref[...])

    mask = mask_ref[...].reshape(B, 1, S)            # additive, 0 keep / -1e4 drop
    scale = 1.0 / (float(head_dim) ** 0.5)

    for l in range(n_layers):                        # static unroll (N_LAYERS=2)
        xb = x.astype(jnp.bfloat16)

        # --- attention: ONE fused QKV dot (lane-dense N = 3H) ---
        qkv = (jnp.dot(xb, wqkv_ref[l], preferred_element_type=jnp.float32)
               + bqkv_ref[l])                        # (BS, 3H) f32
        ctx_heads = []
        for h in range(n_heads):                     # static unroll; vreg lane slices only
            lo = h * head_dim
            q = qkv[:, lo:lo + head_dim].reshape(B, S, head_dim)
            k = qkv[:, H + lo:H + lo + head_dim].reshape(B, S, head_dim)
            v = qkv[:, 2 * H + lo:2 * H + lo + head_dim].reshape(B, S, head_dim)
            s = jnp.einsum('bqd,bkd->bqk', q.astype(jnp.bfloat16),
                           k.astype(jnp.bfloat16),
                           preferred_element_type=jnp.float32) * scale + mask
            s = s - jnp.max(s, axis=-1, keepdims=True)       # softmax in f32
            p = jnp.exp(s)
            a = p * pl.reciprocal(jnp.sum(p, axis=-1, keepdims=True), approx=True)
            ctx = jnp.einsum('bqk,bkd->bqd', a.astype(jnp.bfloat16),
                             v.astype(jnp.bfloat16),
                             preferred_element_type=jnp.float32)
            ctx_heads.append(ctx.reshape(BS, head_dim))
        ctx_all = jnp.concatenate(ctx_heads, axis=-1)        # (BS, H)

        # single output projection (K = H), replaces per-head K=HEAD_DIM dots
        attn = (jnp.dot(ctx_all.astype(jnp.bfloat16), wo_ref[l],
                        preferred_element_type=jnp.float32) + bo_ref[l])
        h1 = _layer_norm(x + attn, g1_ref[l], b1_ref[l])

        # --- feed-forward ---
        inter = _gelu(jnp.dot(h1.astype(jnp.bfloat16), wi_ref[l],
                              preferred_element_type=jnp.float32) + bi_ref[l])
        ff = jnp.dot(inter.astype(jnp.bfloat16), wo2_ref[l],
                     preferred_element_type=jnp.float32) + bo2_ref[l]
        x = _layer_norm(h1 + ff, g2_ref[l], b2_ref[l])

    # --- pooler on [CLS] + dropout(identity at inference) + classifier ---
    cls_tok = x.reshape(B, S, H)[:, 0, :]
    pooled = jnp.tanh(jnp.dot(cls_tok.astype(jnp.bfloat16), wp_ref[...],
                              preferred_element_type=jnp.float32) + bp_ref[...])
    # bf16 x bf16 classifier dot; output padded to 128 lanes -> unmasked store.
    logits_full = (jnp.dot(pooled.astype(jnp.bfloat16), wc_ref[...],
                           preferred_element_type=jnp.float32) + bc_ref[...])
    logits_ref[...] = logits_full

    if compute_loss:
        # Numerically-stable BCEWithLogitsLoss(reduction='mean', pos_weight=pw)
        # on the real (unpadded) label columns.
        z = logits_full[:, :NUM_LABELS]
        y = labels_ref[...]
        pw = pw_ref[...]
        sp_neg = jnp.maximum(-z, 0.0) + jnp.log(1.0 + jnp.exp(-jnp.abs(z)))   # softplus(-z)
        elem = (1.0 - y) * z + (pw * y + 1.0 - y) * sp_neg
        loss_ref[...] = jnp.mean(elem, axis=(0, 1), keepdims=True)


# ---------------- wrapper: one grid-less pallas_call ----------------

def _cost_estimate(B, S, compute_loss):
    H, I, L, NH, HD = HIDDEN, INTERMEDIATE, N_LAYERS, N_HEADS, HEAD_DIM
    BS = B * S
    flops = 2 * L * (BS * H * 3 * H            # fused QKV
                     + 2 * B * NH * S * S * HD  # scores + ctx
                     + BS * H * H               # output proj
                     + 2 * BS * H * I)          # FFN in + out
    flops += 2 * (B * H * H + B * H * NUM_LABELS_PAD)          # pooler + classifier
    trans = L * (B * NH * S * S + BS * I) + B * H + (B * NUM_LABELS if compute_loss else 0)
    weight_elems = (L * (H * 3 * H + 3 * H + H * H + H + H * I + I + I * H + H + 4 * H)
                    + H * H + H + H * NUM_LABELS_PAD + NUM_LABELS_PAD + 2 * H)
    bytes_accessed = (B * S * H * 4 + B * S * 4 + weight_elems * 2
                      + B * NUM_LABELS_PAD * 4 + (B * NUM_LABELS * 8 + 4 if compute_loss else 0))
    return pl.CostEstimate(flops=int(flops), transcendentals=int(trans),
                           bytes_accessed=int(bytes_accessed))


def _fused_call(emb, mask_add, params, labels=None, pos_weight=None):
    B, S, _ = emb.shape
    compute_loss = labels is not None
    kern = functools.partial(fused_bert_kernel, n_layers=N_LAYERS, n_heads=N_HEADS,
                             head_dim=HEAD_DIM, compute_loss=compute_loss)
    inputs = [emb, mask_add, params['emb_g'], params['emb_b'],
              params['wqkv'], params['bqkv'], params['wo'], params['bo'],
              params['g1'], params['b1'], params['wi'], params['bi'],
              params['wo2'], params['bo2'], params['g2'], params['b2'],
              params['pooler_w'], params['pooler_b'],
              params['cls_w'], params['cls_b']]
    if compute_loss:
        inputs += [labels, pos_weight]
        out_shape = (jax.ShapeDtypeStruct((B, NUM_LABELS_PAD), jnp.float32),
                     jax.ShapeDtypeStruct((1, 1), jnp.float32))
    else:
        out_shape = jax.ShapeDtypeStruct((B, NUM_LABELS_PAD), jnp.float32)
    return pl.pallas_call(
        kern,
        out_shape=out_shape,
        compiler_params=pltpu.CompilerParams(vmem_limit_bytes=32 * 1024 * 1024),
        cost_estimate=_cost_estimate(B, S, compute_loss),
    )(*inputs)


@functools.partial(jax.jit, static_argnames=('compute_loss',))
def _forward_jit(params, input_ids, attention_mask, token_type_ids,
                 labels, pos_weight, compute_loss):
    B, S = input_ids.shape
    # Embedding gathers + 3-way sum are plain-JAX glue fused under this jit;
    # the kernel receives a single (B,S,H) tensor (1/3 the activation input DMA).
    emb = (params['word_emb'][input_ids]
           + params['pos_emb'][:S][None, :, :]
           + params['type_emb'][token_type_ids])
    # HF additive attention mask convention: 0 keep / -10000 mask.
    mask_add = (1.0 - attention_mask.astype(jnp.float32)) * -10000.0
    if compute_loss:
        logits_pad, loss = _fused_call(emb, mask_add, params,
                                       labels.astype(jnp.float32), pos_weight)
        return loss[0, 0], logits_pad[:, :NUM_LABELS]
    logits_pad = _fused_call(emb, mask_add, params)
    return logits_pad[:, :NUM_LABELS]


def forward(params, input_ids, attention_mask, token_type_ids,
            labels=None, class_weights=None):
    if labels is None:
        logits = _forward_jit(params, input_ids, attention_mask, token_type_ids,
                              None, None, compute_loss=False)
        return (logits,)
    # num_labels == 2 path: BCEWithLogitsLoss(reduction='mean', pos_weight=class_weights)
    if class_weights is None:
        pw = jnp.ones((1, NUM_LABELS), jnp.float32)
    else:
        pw = class_weights.reshape(1, NUM_LABELS).astype(jnp.float32)
    loss, logits = _forward_jit(params, input_ids, attention_mask, token_type_ids,
                                labels, pw, compute_loss=True)
    return (loss, logits)


# ---------------- parameter init (deterministic, synthetic) ----------------
# Weight layouts are pre-packed for the kernel (free at init time):
#   * fused QKV weight (H, 3H) per layer, stacked on a leading L axis;
#     column order = [Q heads | K heads | V heads].
#   * classifier weight stored (H, NUM_LABELS_PAD) bf16, zero-padded past NUM_LABELS.
#   * matmul weights stored bf16; biases / LN params stay f32.

def init_params(key):
    def nrm(k, shape, dtype=jnp.float32):
        return (0.02 * jax.random.normal(k, shape, jnp.float32)).astype(dtype)

    L, H, I = N_LAYERS, HIDDEN, INTERMEDIATE
    ks = iter(jax.random.split(key, 16))

    cls_w = jnp.zeros((H, NUM_LABELS_PAD), jnp.float32)
    cls_w = cls_w.at[:, :NUM_LABELS].set(nrm(next(ks), (H, NUM_LABELS)))

    params = {
        'word_emb': nrm(next(ks), (VOCAB, H)),
        'pos_emb':  nrm(next(ks), (MAX_POS, H)),
        'type_emb': nrm(next(ks), (TYPE_VOCAB, H)),
        'emb_g': jnp.ones((1, H), jnp.float32),
        'emb_b': jnp.zeros((1, H), jnp.float32),
        # fused QKV projection, stacked per layer
        'wqkv': nrm(next(ks), (L, H, 3 * H), jnp.bfloat16),
        'bqkv': jnp.zeros((L, 1, 3 * H), jnp.float32),
        # attention output projection
        'wo':   nrm(next(ks), (L, H, H), jnp.bfloat16),
        'bo':   jnp.zeros((L, 1, H), jnp.float32),
        'g1': jnp.ones((L, 1, H), jnp.float32),
        'b1': jnp.zeros((L, 1, H), jnp.float32),
        # FFN, stacked per layer
        'wi':  nrm(next(ks), (L, H, I), jnp.bfloat16),
        'bi':  jnp.zeros((L, 1, I), jnp.float32),
        'wo2': nrm(next(ks), (L, I, H), jnp.bfloat16),
        'bo2': jnp.zeros((L, 1, H), jnp.float32),
        'g2': jnp.ones((L, 1, H), jnp.float32),
        'b2': jnp.zeros((L, 1, H), jnp.float32),
        # pooler + classifier
        'pooler_w': nrm(next(ks), (H, H), jnp.bfloat16),
        'pooler_b': jnp.zeros((1, H), jnp.float32),
        'cls_w': cls_w.astype(jnp.bfloat16),                  # (H, 128) lane-dense
        'cls_b': jnp.zeros((1, NUM_LABELS_PAD), jnp.float32),
    }
    return params


# ---------------- demo ----------------

if __name__ == "__main__":
    key = jax.random.PRNGKey(0)
    k_ids, k_lab, k_par = jax.random.split(key, 3)

    B, S = 2, 8
    input_ids = jax.random.randint(k_ids, (B, S), 0, VOCAB, dtype=jnp.int32)
    attention_mask = jnp.array([[1, 1, 1, 1, 1, 1, 1, 1],
                                [1, 1, 1, 1, 1, 1, 0, 0]], dtype=jnp.int32)
    token_type_ids = jnp.zeros((B, S), dtype=jnp.int32)
    labels = jax.random.bernoulli(k_lab, 0.5, (B, NUM_LABELS)).astype(jnp.float32)
    class_weights = jnp.ones((NUM_LABELS,), jnp.float32)

    params = init_params(k_par)

    # with labels: (loss, logits)
    loss, logits = forward(params, input_ids, attention_mask, token_type_ids,
                           labels=labels, class_weights=class_weights)
    # without labels: (logits,)
    (logits_only,) = forward(params, input_ids, attention_mask, token_type_ids)
    jax.block_until_ready((loss, logits, logits_only))

    assert logits.shape == (B, NUM_LABELS)
    assert logits_only.shape == (B, NUM_LABELS)
    assert loss.shape == ()
    print("KERNEL_OK")
</pallas_src>

<mosaic_0001>
module attributes {stable_mosaic.version = 11 : i64} {
  func.func @fused_bert_kernel(%arg0: memref<2x8x32xf32, #tpu.memory_space<vmem>>, %arg1: memref<2x8xf32, #tpu.memory_space<vmem>>, %arg2: memref<1x32xf32, #tpu.memory_space<vmem>>, %arg3: memref<1x32xf32, #tpu.memory_space<vmem>>, %arg4: memref<2x32x96xbf16, #tpu.memory_space<vmem>>, %arg5: memref<2x1x96xf32, #tpu.memory_space<vmem>>, %arg6: memref<2x32x32xbf16, #tpu.memory_space<vmem>>, %arg7: memref<2x1x32xf32, #tpu.memory_space<vmem>>, %arg8: memref<2x1x32xf32, #tpu.memory_space<vmem>>, %arg9: memref<2x1x32xf32, #tpu.memory_space<vmem>>, %arg10: memref<2x32x64xbf16, #tpu.memory_space<vmem>>, %arg11: memref<2x1x64xf32, #tpu.memory_space<vmem>>, %arg12: memref<2x64x32xbf16, #tpu.memory_space<vmem>>, %arg13: memref<2x1x32xf32, #tpu.memory_space<vmem>>, %arg14: memref<2x1x32xf32, #tpu.memory_space<vmem>>, %arg15: memref<2x1x32xf32, #tpu.memory_space<vmem>>, %arg16: memref<32x32xbf16, #tpu.memory_space<vmem>>, %arg17: memref<1x32xf32, #tpu.memory_space<vmem>>, %arg18: memref<32x128xbf16, #tpu.memory_space<vmem>>, %arg19: memref<1x128xf32, #tpu.memory_space<vmem>>, %arg20: memref<2x2xf32, #tpu.memory_space<vmem>>, %arg21: memref<1x2xf32, #tpu.memory_space<vmem>>, %arg22: memref<2x128xf32, #tpu.memory_space<vmem>>, %arg23: memref<1x1xf32, #tpu.memory_space<vmem>>) attributes {dimension_semantics = [], scalar_prefetch = 0 : i64, scratch_operands = 0 : i64, tpu.core_type = #tpu.core_type<tc>} {
    %c0 = arith.constant 0 : index
    %c0_0 = arith.constant 0 : index
    %c0_1 = arith.constant 0 : index
    %0 = vector.load %arg0[%c0, %c0_0, %c0_1] : memref<2x8x32xf32, #tpu.memory_space<vmem>>, vector<2x8x32xf32>
    %1 = vector.shape_cast %0 : vector<2x8x32xf32> to vector<16x32xf32>
    %c0_2 = arith.constant 0 : index
    %c0_3 = arith.constant 0 : index
    %2 = vector.load %arg2[%c0_2, %c0_3] : memref<1x32xf32, #tpu.memory_space<vmem>>, vector<1x32xf32>
    %c0_4 = arith.constant 0 : index
    %c0_5 = arith.constant 0 : index
    %3 = vector.load %arg3[%c0_4, %c0_5] : memref<1x32xf32, #tpu.memory_space<vmem>>, vector<1x32xf32>
    %cst = arith.constant dense<0.000000e+00> : vector<16xf32>
    %4 = vector.multi_reduction <add>, %1, %cst [1] : vector<16x32xf32> to vector<16xf32>
    %5 = vector.shape_cast %4 : vector<16xf32> to vector<16x1xf32>
    %cst_6 = arith.constant 3.200000e+01 : f32
    %6 = vector.broadcast %cst_6 : f32 to vector<16x1xf32>
    %7 = arith.divf %5, %6 : vector<16x1xf32>
    %8 = vector.broadcast %7 : vector<16x1xf32> to vector<16x32xf32>
    %9 = arith.subf %1, %8 : vector<16x32xf32>
    %10 = arith.mulf %9, %9 : vector<16x32xf32>
    %cst_7 = arith.constant dense<0.000000e+00> : vector<16xf32>
    %11 = vector.multi_reduction <add>, %10, %cst_7 [1] : vector<16x32xf32> to vector<16xf32>
    %12 = vector.shape_cast %11 : vector<16xf32> to vector<16x1xf32>
    %cst_8 = arith.constant 3.200000e+01 : f32
    %13 = vector.broadcast %cst_8 : f32 to vector<16x1xf32>
    %14 = arith.divf %12, %13 : vector<16x1xf32>
    %15 = vector.broadcast %7 : vector<16x1xf32> to vector<16x32xf32>
    %16 = arith.subf %1, %15 : vector<16x32xf32>
    %cst_9 = arith.constant 9.99999996E-13 : f32
    %17 = vector.broadcast %cst_9 : f32 to vector<16x1xf32>
    %18 = arith.addf %14, %17 : vector<16x1xf32>
    %19 = math.rsqrt %18 : vector<16x1xf32>
    %20 = vector.broadcast %19 : vector<16x1xf32> to vector<16x32xf32>
    %21 = arith.mulf %16, %20 : vector<16x32xf32>
    %22 = vector.broadcast %2 : vector<1x32xf32> to vector<16x32xf32>
    %23 = arith.mulf %21, %22 : vector<16x32xf32>
    %24 = vector.broadcast %3 : vector<1x32xf32> to vector<16x32xf32>
    %25 = arith.addf %23, %24 : vector<16x32xf32>
    %c0_10 = arith.constant 0 : index
    %c0_11 = arith.constant 0 : index
    %26 = vector.load %arg1[%c0_10, %c0_11] : memref<2x8xf32, #tpu.memory_space<vmem>>, vector<2x8xf32>
    %27 = vector.shape_cast %26 : vector<2x8xf32> to vector<2x1x8xf32>
    %28 = arith.truncf %25 : vector<16x32xf32> to vector<16x32xbf16>
    %c0_12 = arith.constant 0 : index
    %c0_13 = arith.constant 0 : index
    %c0_14 = arith.constant 0 : index
    %29 = vector.load %arg4[%c0_12, %c0_13, %c0_14] : memref<2x32x96xbf16, #tpu.memory_space<vmem>>, vector<1x32x96xbf16>
    %30 = vector.shape_cast %29 : vector<1x32x96xbf16> to vector<32x96xbf16>
    %cst_15 = arith.constant dense<0.000000e+00> : vector<16x96xf32>
    %31 = tpu.matmul %28, %30, %cst_15 {dimension_numbers = #tpu.dot_dimension_numbers<[1], [0], [0], [1], [0, 0, 1, 1], [], []>} : vector<16x32xbf16>, vector<32x96xbf16>, vector<16x96xf32> -> vector<16x96xf32>
    %c0_16 = arith.constant 0 : index
    %c0_17 = arith.constant 0 : index
    %c0_18 = arith.constant 0 : index
    %32 = vector.load %arg5[%c0_16, %c0_17, %c0_18] : memref<2x1x96xf32, #tpu.memory_space<vmem>>, vector<1x1x96xf32>
    %33 = vector.shape_cast %32 : vector<1x1x96xf32> to vector<1x96xf32>
    %34 = vector.broadcast %33 : vector<1x96xf32> to vector<16x96xf32>
    %35 = arith.addf %31, %34 : vector<16x96xf32>
    %36 = vector.extract_strided_slice %35 {offsets = [0, 0], sizes = [16, 16], strides = [1, 1]} : vector<16x96xf32> to vector<16x16xf32>
    %37 = vector.shape_cast %36 : vector<16x16xf32> to vector<2x8x16xf32>
    %38 = vector.extract_strided_slice %35 {offsets = [0, 32], sizes = [16, 16], strides = [1, 1]} : vector<16x96xf32> to vector<16x16xf32>
    %39 = vector.shape_cast %38 : vector<16x16xf32> to vector<2x8x16xf32>
    %40 = vector.extract_strided_slice %35 {offsets = [0, 64], sizes = [16, 16], strides = [1, 1]} : vector<16x96xf32> to vector<16x16xf32>
    %41 = vector.shape_cast %40 : vector<16x16xf32> to vector<2x8x16xf32>
    %42 = arith.truncf %37 : vector<2x8x16xf32> to vector<2x8x16xbf16>
    %43 = arith.truncf %39 : vector<2x8x16xf32> to vector<2x8x16xbf16>
    "tpu.trace_start"() <{level = 10 : i32, message = "bqd,bkd->bqk"}> : () -> ()
    %cst_19 = arith.constant dense<0.000000e+00> : vector<2x8x8xf32>
    %44 = tpu.matmul %42, %43, %cst_19 {dimension_numbers = #tpu.dot_dimension_numbers<[2], [2], [1], [1], [0, 0, 0, 1, 1, 1], [0], [0]>} : vector<2x8x16xbf16>, vector<2x8x16xbf16>, vector<2x8x8xf32> -> vector<2x8x8xf32>
    "tpu.trace_stop"() : () -> ()
    %cst_20 = arith.constant 2.500000e-01 : f32
    %45 = vector.broadcast %cst_20 : f32 to vector<2x8x8xf32>
    %46 = arith.mulf %44, %45 : vector<2x8x8xf32>
    %47 = vector.broadcast %27 : vector<2x1x8xf32> to vector<2x8x8xf32>
    %48 = arith.addf %46, %47 : vector<2x8x8xf32>
    %cst_21 = arith.constant dense<0xFF800000> : vector<2x8xf32>
    %49 = vector.multi_reduction <maximumf>, %48, %cst_21 [2] : vector<2x8x8xf32> to vector<2x8xf32>
    %50 = vector.shape_cast %49 : vector<2x8xf32> to vector<2x8x1xf32>
    %51 = vector.broadcast %50 : vector<2x8x1xf32> to vector<2x8x8xf32>
    %52 = arith.subf %48, %51 : vector<2x8x8xf32>
    %53 = math.exp %52 : vector<2x8x8xf32>
    %cst_22 = arith.constant dense<0.000000e+00> : vector<2x8xf32>
    %54 = vector.multi_reduction <add>, %53, %cst_22 [2] : vector<2x8x8xf32> to vector<2x8xf32>
    %55 = vector.shape_cast %54 : vector<2x8xf32> to vector<2x8x1xf32>
    %56 = tpu.reciprocal %55 {approx = true} : vector<2x8x1xf32> -> vector<2x8x1xf32>
    %57 = vector.broadcast %56 : vector<2x8x1xf32> to vector<2x8x8xf32>
    %58 = arith.mulf %53, %57 : vector<2x8x8xf32>
    %59 = arith.truncf %58 : vector<2x8x8xf32> to vector<2x8x8xbf16>
    %60 = arith.truncf %41 : vector<2x8x16xf32> to vector<2x8x16xbf16>
    "tpu.trace_start"() <{level = 10 : i32, message = "bqk,bkd->bqd"}> : () -> ()
    %cst_23 = arith.constant dense<0.000000e+00> : vector<2x8x16xf32>
    %61 = tpu.matmul %59, %60, %cst_23 {dimension_numbers = #tpu.dot_dimension_numbers<[2], [1], [1], [2], [0, 0, 0, 1, 1, 2], [0], [0]>} : vector<2x8x8xbf16>, vector<2x8x16xbf16>, vector<2x8x16xf32> -> vector<2x8x16xf32>
    "tpu.trace_stop"() : () -> ()
    %62 = vector.shape_cast %61 : vector<2x8x16xf32> to vector<16x16xf32>
    %63 = vector.extract_strided_slice %35 {offsets = [0, 16], sizes = [16, 16], strides = [1, 1]} : vector<16x96xf32> to vector<16x16xf32>
    %64 = vector.shape_cast %63 : vector<16x16xf32> to vector<2x8x16xf32>
    %65 = vector.extract_strided_slice %35 {offsets = [0, 48], sizes = [16, 16], strides = [1, 1]} : vector<16x96xf32> to vector<16x16xf32>
    %66 = vector.shape_cast %65 : vector<16x16xf32> to vector<2x8x16xf32>
    %67 = vector.extract_strided_slice %35 {offsets = [0, 80], sizes = [16, 16], strides = [1, 1]} : vector<16x96xf32> to vector<16x16xf32>
    %68 = vector.shape_cast %67 : vector<16x16xf32> to vector<2x8x16xf32>
    %69 = arith.truncf %64 : vector<2x8x16xf32> to vector<2x8x16xbf16>
    %70 = arith.truncf %66 : vector<2x8x16xf32> to vector<2x8x16xbf16>
    "tpu.trace_start"() <{level = 10 : i32, message = "bqd,bkd->bqk"}> : () -> ()
    %cst_24 = arith.constant dense<0.000000e+00> : vector<2x8x8xf32>
    %71 = tpu.matmul %69, %70, %cst_24 {dimension_numbers = #tpu.dot_dimension_numbers<[2], [2], [1], [1], [0, 0, 0, 1, 1, 1], [0], [0]>} : vector<2x8x16xbf16>, vector<2x8x16xbf16>, vector<2x8x8xf32> -> vector<2x8x8xf32>
    "tpu.trace_stop"() : () -> ()
    %cst_25 = arith.constant 2.500000e-01 : f32
    %72 = vector.broadcast %cst_25 : f32 to vector<2x8x8xf32>
    %73 = arith.mulf %71, %72 : vector<2x8x8xf32>
    %74 = vector.broadcast %27 : vector<2x1x8xf32> to vector<2x8x8xf32>
    %75 = arith.addf %73, %74 : vector<2x8x8xf32>
    %cst_26 = arith.constant dense<0xFF800000> : vector<2x8xf32>
    %76 = vector.multi_reduction <maximumf>, %75, %cst_26 [2] : vector<2x8x8xf32> to vector<2x8xf32>
    %77 = vector.shape_cast %76 : vector<2x8xf32> to vector<2x8x1xf32>
    %78 = vector.broadcast %77 : vector<2x8x1xf32> to vector<2x8x8xf32>
    %79 = arith.subf %75, %78 : vector<2x8x8xf32>
    %80 = math.exp %79 : vector<2x8x8xf32>
    %cst_27 = arith.constant dense<0.000000e+00> : vector<2x8xf32>
    %81 = vector.multi_reduction <add>, %80, %cst_27 [2] : vector<2x8x8xf32> to vector<2x8xf32>
    %82 = vector.shape_cast %81 : vector<2x8xf32> to vector<2x8x1xf32>
    %83 = tpu.reciprocal %82 {approx = true} : vector<2x8x1xf32> -> vector<2x8x1xf32>
    %84 = vector.broadcast %83 : vector<2x8x1xf32> to vector<2x8x8xf32>
    %85 = arith.mulf %80, %84 : vector<2x8x8xf32>
    %86 = arith.truncf %85 : vector<2x8x8xf32> to vector<2x8x8xbf16>
    %87 = arith.truncf %68 : vector<2x8x16xf32> to vector<2x8x16xbf16>
    "tpu.trace_start"() <{level = 10 : i32, message = "bqk,bkd->bqd"}> : () -> ()
    %cst_28 = arith.constant dense<0.000000e+00> : vector<2x8x16xf32>
    %88 = tpu.matmul %86, %87, %cst_28 {dimension_numbers = #tpu.dot_dimension_numbers<[2], [1], [1], [2], [0, 0, 0, 1, 1, 2], [0], [0]>} : vector<2x8x8xbf16>, vector<2x8x16xbf16>, vector<2x8x16xf32> -> vector<2x8x16xf32>
    "tpu.trace_stop"() : () -> ()
    %89 = vector.shape_cast %88 : vector<2x8x16xf32> to vector<16x16xf32>
    %90 = tpu.concatenate %62, %89 in 1 : vector<16x16xf32>, vector<16x16xf32> -> vector<16x32xf32>
    %91 = arith.truncf %90 : vector<16x32xf32> to vector<16x32xbf16>
    %c0_29 = arith.constant 0 : index
    %c0_30 = arith.constant 0 : index
    %c0_31 = arith.constant 0 : index
    %92 = vector.load %arg6[%c0_29, %c0_30, %c0_31] : memref<2x32x32xbf16, #tpu.memory_space<vmem>>, vector<1x32x32xbf16>
    %93 = vector.shape_cast %92 : vector<1x32x32xbf16> to vector<32x32xbf16>
    %cst_32 = arith.constant dense<0.000000e+00> : vector<16x32xf32>
    %94 = tpu.matmul %91, %93, %cst_32 {dimension_numbers = #tpu.dot_dimension_numbers<[1], [0], [0], [1], [0, 0, 1, 1], [], []>} : vector<16x32xbf16>, vector<32x32xbf16>, vector<16x32xf32> -> vector<16x32xf32>
    %c0_33 = arith.constant 0 : index
    %c0_34 = arith.constant 0 : index
    %c0_35 = arith.constant 0 : index
    %95 = vector.load %arg7[%c0_33, %c0_34, %c0_35] : memref<2x1x32xf32, #tpu.memory_space<vmem>>, vector<1x1x32xf32>
    %96 = vector.shape_cast %95 : vector<1x1x32xf32> to vector<1x32xf32>
    %97 = vector.broadcast %96 : vector<1x32xf32> to vector<16x32xf32>
    %98 = arith.addf %94, %97 : vector<16x32xf32>
    %99 = arith.addf %25, %98 : vector<16x32xf32>
    %c0_36 = arith.constant 0 : index
    %c0_37 = arith.constant 0 : index
    %c0_38 = arith.constant 0 : index
    %100 = vector.load %arg8[%c0_36, %c0_37, %c0_38] : memref<2x1x32xf32, #tpu.memory_space<vmem>>, vector<1x1x32xf32>
    %101 = vector.shape_cast %100 : vector<1x1x32xf32> to vector<1x32xf32>
    %c0_39 = arith.constant 0 : index
    %c0_40 = arith.constant 0 : index
    %c0_41 = arith.constant 0 : index
    %102 = vector.load %arg9[%c0_39, %c0_40, %c0_41] : memref<2x1x32xf32, #tpu.memory_space<vmem>>, vector<1x1x32xf32>
    %103 = vector.shape_cast %102 : vector<1x1x32xf32> to vector<1x32xf32>
    %cst_42 = arith.constant dense<0.000000e+00> : vector<16xf32>
    %104 = vector.multi_reduction <add>, %99, %cst_42 [1] : vector<16x32xf32> to vector<16xf32>
    %105 = vector.shape_cast %104 : vector<16xf32> to vector<16x1xf32>
    %cst_43 = arith.constant 3.200000e+01 : f32
    %106 = vector.broadcast %cst_43 : f32 to vector<16x1xf32>
    %107 = arith.divf %105, %106 : vector<16x1xf32>
    %108 = vector.broadcast %107 : vector<16x1xf32> to vector<16x32xf32>
    %109 = arith.subf %99, %108 : vector<16x32xf32>
    %110 = arith.mulf %109, %109 : vector<16x32xf32>
    %cst_44 = arith.constant dense<0.000000e+00> : vector<16xf32>
    %111 = vector.multi_reduction <add>, %110, %cst_44 [1] : vector<16x32xf32> to vector<16xf32>
    %112 = vector.shape_cast %111 : vector<16xf32> to vector<16x1xf32>
    %cst_45 = arith.constant 3.200000e+01 : f32
    %113 = vector.broadcast %cst_45 : f32 to vector<16x1xf32>
    %114 = arith.divf %112, %113 : vector<16x1xf32>
    %115 = vector.broadcast %107 : vector<16x1xf32> to vector<16x32xf32>
    %116 = arith.subf %99, %115 : vector<16x32xf32>
    %cst_46 = arith.constant 9.99999996E-13 : f32
    %117 = vector.broadcast %cst_46 : f32 to vector<16x1xf32>
    %118 = arith.addf %114, %117 : vector<16x1xf32>
    %119 = math.rsqrt %118 : vector<16x1xf32>
    %120 = vector.broadcast %119 : vector<16x1xf32> to vector<16x32xf32>
    %121 = arith.mulf %116, %120 : vector<16x32xf32>
    %122 = vector.broadcast %101 : vector<1x32xf32> to vector<16x32xf32>
    %123 = arith.mulf %121, %122 : vector<16x32xf32>
    %124 = vector.broadcast %103 : vector<1x32xf32> to vector<16x32xf32>
    %125 = arith.addf %123, %124 : vector<16x32xf32>
    %126 = arith.truncf %125 : vector<16x32xf32> to vector<16x32xbf16>
    %c0_47 = arith.constant 0 : index
    %c0_48 = arith.constant 0 : index
    %c0_49 = arith.constant 0 : index
    %127 = vector.load %arg10[%c0_47, %c0_48, %c0_49] : memref<2x32x64xbf16, #tpu.memory_space<vmem>>, vector<1x32x64xbf16>
    %128 = vector.shape_cast %127 : vector<1x32x64xbf16> to vector<32x64xbf16>
    %cst_50 = arith.constant dense<0.000000e+00> : vector<16x64xf32>
    %129 = tpu.matmul %126, %128, %cst_50 {dimension_numbers = #tpu.dot_dimension_numbers<[1], [0], [0], [1], [0, 0, 1, 1], [], []>} : vector<16x32xbf16>, vector<32x64xbf16>, vector<16x64xf32> -> vector<16x64xf32>
    %c0_51 = arith.constant 0 : index
    %c0_52 = arith.constant 0 : index
    %c0_53 = arith.constant 0 : index
    %130 = vector.load %arg11[%c0_51, %c0_52, %c0_53] : memref<2x1x64xf32, #tpu.memory_space<vmem>>, vector<1x1x64xf32>
    %131 = vector.shape_cast %130 : vector<1x1x64xf32> to vector<1x64xf32>
    %132 = vector.broadcast %131 : vector<1x64xf32> to vector<16x64xf32>
    %133 = arith.addf %129, %132 : vector<16x64xf32>
    %cst_54 = arith.constant 5.000000e-01 : f32
    %134 = vector.broadcast %cst_54 : f32 to vector<16x64xf32>
    %135 = arith.mulf %134, %133 : vector<16x64xf32>
    %cst_55 = arith.constant 4.471500e-02 : f32
    %136 = vector.broadcast %cst_55 : f32 to vector<16x64xf32>
    %137 = arith.mulf %136, %133 : vector<16x64xf32>
    %138 = arith.mulf %137, %133 : vector<16x64xf32>
    %139 = arith.mulf %138, %133 : vector<16x64xf32>
    %140 = arith.addf %133, %139 : vector<16x64xf32>
    %cst_56 = arith.constant 0.797884583 : f32
    %141 = vector.broadcast %cst_56 : f32 to vector<16x64xf32>
    %142 = arith.mulf %141, %140 : vector<16x64xf32>
    %143 = math.tanh %142 : vector<16x64xf32>
    %cst_57 = arith.constant 1.000000e+00 : f32
    %144 = vector.broadcast %cst_57 : f32 to vector<16x64xf32>
    %145 = arith.addf %144, %143 : vector<16x64xf32>
    %146 = arith.mulf %135, %145 : vector<16x64xf32>
    %147 = arith.truncf %146 : vector<16x64xf32> to vector<16x64xbf16>
    %c0_58 = arith.constant 0 : index
    %c0_59 = arith.constant 0 : index
    %c0_60 = arith.constant 0 : index
    %148 = vector.load %arg12[%c0_58, %c0_59, %c0_60] : memref<2x64x32xbf16, #tpu.memory_space<vmem>>, vector<1x64x32xbf16>
    %149 = vector.shape_cast %148 : vector<1x64x32xbf16> to vector<64x32xbf16>
    %cst_61 = arith.constant dense<0.000000e+00> : vector<16x32xf32>
    %150 = tpu.matmul %147, %149, %cst_61 {dimension_numbers = #tpu.dot_dimension_numbers<[1], [0], [0], [1], [0, 0, 1, 1], [], []>} : vector<16x64xbf16>, vector<64x32xbf16>, vector<16x32xf32> -> vector<16x32xf32>
    %c0_62 = arith.constant 0 : index
    %c0_63 = arith.constant 0 : index
    %c0_64 = arith.constant 0 : index
    %151 = vector.load %arg13[%c0_62, %c0_63, %c0_64] : memref<2x1x32xf32, #tpu.memory_space<vmem>>, vector<1x1x32xf32>
    %152 = vector.shape_cast %151 : vector<1x1x32xf32> to vector<1x32xf32>
    %153 = vector.broadcast %152 : vector<1x32xf32> to vector<16x32xf32>
    %154 = arith.addf %150, %153 : vector<16x32xf32>
    %155 = arith.addf %125, %154 : vector<16x32xf32>
    %c0_65 = arith.constant 0 : index
    %c0_66 = arith.constant 0 : index
    %c0_67 = arith.constant 0 : index
    %156 = vector.load %arg14[%c0_65, %c0_66, %c0_67] : memref<2x1x32xf32, #tpu.memory_space<vmem>>, vector<1x1x32xf32>
    %157 = vector.shape_cast %156 : vector<1x1x32xf32> to vector<1x32xf32>
    %c0_68 = arith.constant 0 : index
    %c0_69 = arith.constant 0 : index
    %c0_70 = arith.constant 0 : index
    %158 = vector.load %arg15[%c0_68, %c0_69, %c0_70] : memref<2x1x32xf32, #tpu.memory_space<vmem>>, vector<1x1x32xf32>
    %159 = vector.shape_cast %158 : vector<1x1x32xf32> to vector<1x32xf32>
    %cst_71 = arith.constant dense<0.000000e+00> : vector<16xf32>
    %160 = vector.multi_reduction <add>, %155, %cst_71 [1] : vector<16x32xf32> to vector<16xf32>
    %161 = vector.shape_cast %160 : vector<16xf32> to vector<16x1xf32>
    %cst_72 = arith.constant 3.200000e+01 : f32
    %162 = vector.broadcast %cst_72 : f32 to vector<16x1xf32>
    %163 = arith.divf %161, %162 : vector<16x1xf32>
    %164 = vector.broadcast %163 : vector<16x1xf32> to vector<16x32xf32>
    %165 = arith.subf %155, %164 : vector<16x32xf32>
    %166 = arith.mulf %165, %165 : vector<16x32xf32>
    %cst_73 = arith.constant dense<0.000000e+00> : vector<16xf32>
    %167 = vector.multi_reduction <add>, %166, %cst_73 [1] : vector<16x32xf32> to vector<16xf32>
    %168 = vector.shape_cast %167 : vector<16xf32> to vector<16x1xf32>
    %cst_74 = arith.constant 3.200000e+01 : f32
    %169 = vector.broadcast %cst_74 : f32 to vector<16x1xf32>
    %170 = arith.divf %168, %169 : vector<16x1xf32>
    %171 = vector.broadcast %163 : vector<16x1xf32> to vector<16x32xf32>
    %172 = arith.subf %155, %171 : vector<16x32xf32>
    %cst_75 = arith.constant 9.99999996E-13 : f32
    %173 = vector.broadcast %cst_75 : f32 to vector<16x1xf32>
    %174 = arith.addf %170, %173 : vector<16x1xf32>
    %175 = math.rsqrt %174 : vector<16x1xf32>
    %176 = vector.broadcast %175 : vector<16x1xf32> to vector<16x32xf32>
    %177 = arith.mulf %172, %176 : vector<16x32xf32>
    %178 = vector.broadcast %157 : vector<1x32xf32> to vector<16x32xf32>
    %179 = arith.mulf %177, %178 : vector<16x32xf32>
    %180 = vector.broadcast %159 : vector<1x32xf32> to vector<16x32xf32>
    %181 = arith.addf %179, %180 : vector<16x32xf32>
    %182 = arith.truncf %181 : vector<16x32xf32> to vector<16x32xbf16>
    %c1 = arith.constant 1 : index
    %c0_76 = arith.constant 0 : index
    %c0_77 = arith.constant 0 : index
    %183 = vector.load %arg4[%c1, %c0_76, %c0_77] : memref<2x32x96xbf16, #tpu.memory_space<vmem>>, vector<1x32x96xbf16>
    %184 = vector.shape_cast %183 : vector<1x32x96xbf16> to vector<32x96xbf16>
    %cst_78 = arith.constant dense<0.000000e+00> : vector<16x96xf32>
    %185 = tpu.matmul %182, %184, %cst_78 {dimension_numbers = #tpu.dot_dimension_numbers<[1], [0], [0], [1], [0, 0, 1, 1], [], []>} : vector<16x32xbf16>, vector<32x96xbf16>, vector<16x96xf32> -> vector<16x96xf32>
    %c1_79 = arith.constant 1 : index
    %c0_80 = arith.constant 0 : index
    %c0_81 = arith.constant 0 : index
    %186 = vector.load %arg5[%c1_79, %c0_80, %c0_81] : memref<2x1x96xf32, #tpu.memory_space<vmem>>, vector<1x1x96xf32>
    %187 = vector.shape_cast %186 : vector<1x1x96xf32> to vector<1x96xf32>
    %188 = vector.broadcast %187 : vector<1x96xf32> to vector<16x96xf32>
    %189 = arith.addf %185, %188 : vector<16x96xf32>
    %190 = vector.extract_strided_slice %189 {offsets = [0, 0], sizes = [16, 16], strides = [1, 1]} : vector<16x96xf32> to vector<16x16xf32>
    %191 = vector.shape_cast %190 : vector<16x16xf32> to vector<2x8x16xf32>
    %192 = vector.extract_strided_slice %189 {offsets = [0, 32], sizes = [16, 16], strides = [1, 1]} : vector<16x96xf32> to vector<16x16xf32>
    %193 = vector.shape_cast %192 : vector<16x16xf32> to vector<2x8x16xf32>
    %194 = vector.extract_strided_slice %189 {offsets = [0, 64], sizes = [16, 16], strides = [1, 1]} : vector<16x96xf32> to vector<16x16xf32>
    %195 = vector.shape_cast %194 : vector<16x16xf32> to vector<2x8x16xf32>
    %196 = arith.truncf %191 : vector<2x8x16xf32> to vector<2x8x16xbf16>
    %197 = arith.truncf %193 : vector<2x8x16xf32> to vector<2x8x16xbf16>
    "tpu.trace_start"() <{level = 10 : i32, message = "bqd,bkd->bqk"}> : () -> ()
    %cst_82 = arith.constant dense<0.000000e+00> : vector<2x8x8xf32>
    %198 = tpu.matmul %196, %197, %cst_82 {dimension_numbers = #tpu.dot_dimension_numbers<[2], [2], [1], [1], [0, 0, 0, 1, 1, 1], [0], [0]>} : vector<2x8x16xbf16>, vector<2x8x16xbf16>, vector<2x8x8xf32> -> vector<2x8x8xf32>
    "tpu.trace_stop"() : () -> ()
    %cst_83 = arith.constant 2.500000e-01 : f32
    %199 = vector.broadcast %cst_83 : f32 to vector<2x8x8xf32>
    %200 = arith.mulf %198, %199 : vector<2x8x8xf32>
    %201 = vector.broadcast %27 : vector<2x1x8xf32> to vector<2x8x8xf32>
    %202 = arith.addf %200, %201 : vector<2x8x8xf32>
    %cst_84 = arith.constant dense<0xFF800000> : vector<2x8xf32>
    %203 = vector.multi_reduction <maximumf>, %202, %cst_84 [2] : vector<2x8x8xf32> to vector<2x8xf32>
    %204 = vector.shape_cast %203 : vector<2x8xf32> to vector<2x8x1xf32>
    %205 = vector.broadcast %204 : vector<2x8x1xf32> to vector<2x8x8xf32>
    %206 = arith.subf %202, %205 : vector<2x8x8xf32>
    %207 = math.exp %206 : vector<2x8x8xf32>
    %cst_85 = arith.constant dense<0.000000e+00> : vector<2x8xf32>
    %208 = vector.multi_reduction <add>, %207, %cst_85 [2] : vector<2x8x8xf32> to vector<2x8xf32>
    %209 = vector.shape_cast %208 : vector<2x8xf32> to vector<2x8x1xf32>
    %210 = tpu.reciprocal %209 {approx = true} : vector<2x8x1xf32> -> vector<2x8x1xf32>
    %211 = vector.broadcast %210 : vector<2x8x1xf32> to vector<2x8x8xf32>
    %212 = arith.mulf %207, %211 : vector<2x8x8xf32>
    %213 = arith.truncf %212 : vector<2x8x8xf32> to vector<2x8x8xbf16>
    %214 = arith.truncf %195 : vector<2x8x16xf32> to vector<2x8x16xbf16>
    "tpu.trace_start"() <{level = 10 : i32, message = "bqk,bkd->bqd"}> : () -> ()
    %cst_86 = arith.constant dense<0.000000e+00> : vector<2x8x16xf32>
    %215 = tpu.matmul %213, %214, %cst_86 {dimension_numbers = #tpu.dot_dimension_numbers<[2], [1], [1], [2], [0, 0, 0, 1, 1, 2], [0], [0]>} : vector<2x8x8xbf16>, vector<2x8x16xbf16>, vector<2x8x16xf32> -> vector<2x8x16xf32>
    "tpu.trace_stop"() : () -> ()
    %216 = vector.shape_cast %215 : vector<2x8x16xf32> to vector<16x16xf32>
    %217 = vector.extract_strided_slice %189 {offsets = [0, 16], sizes = [16, 16], strides = [1, 1]} : vector<16x96xf32> to vector<16x16xf32>
    %218 = vector.shape_cast %217 : vector<16x16xf32> to vector<2x8x16xf32>
    %219 = vector.extract_strided_slice %189 {offsets = [0, 48], sizes = [16, 16], strides = [1, 1]} : vector<16x96xf32> to vector<16x16xf32>
    %220 = vector.shape_cast %219 : vector<16x16xf32> to vector<2x8x16xf32>
    %221 = vector.extract_strided_slice %189 {offsets = [0, 80], sizes = [16, 16], strides = [1, 1]} : vector<16x96xf32> to vector<16x16xf32>
    %222 = vector.shape_cast %221 : vector<16x16xf32> to vector<2x8x16xf32>
    %223 = arith.truncf %218 : vector<2x8x16xf32> to vector<2x8x16xbf16>
    %224 = arith.truncf %220 : vector<2x8x16xf32> to vector<2x8x16xbf16>
    "tpu.trace_start"() <{level = 10 : i32, message = "bqd,bkd->bqk"}> : () -> ()
    %cst_87 = arith.constant dense<0.000000e+00> : vector<2x8x8xf32>
    %225 = tpu.matmul %223, %224, %cst_87 {dimension_numbers = #tpu.dot_dimension_numbers<[2], [2], [1], [1], [0, 0, 0, 1, 1, 1], [0], [0]>} : vector<2x8x16xbf16>, vector<2x8x16xbf16>, vector<2x8x8xf32> -> vector<2x8x8xf32>
    "tpu.trace_stop"() : () -> ()
    %cst_88 = arith.constant 2.500000e-01 : f32
    %226 = vector.broadcast %cst_88 : f32 to vector<2x8x8xf32>
    %227 = arith.mulf %225, %226 : vector<2x8x8xf32>
    %228 = vector.broadcast %27 : vector<2x1x8xf32> to vector<2x8x8xf32>
    %229 = arith.addf %227, %228 : vector<2x8x8xf32>
    %cst_89 = arith.constant dense<0xFF800000> : vector<2x8xf32>
    %230 = vector.multi_reduction <maximumf>, %229, %cst_89 [2] : vector<2x8x8xf32> to vector<2x8xf32>
    %231 = vector.shape_cast %230 : vector<2x8xf32> to vector<2x8x1xf32>
    %232 = vector.broadcast %231 : vector<2x8x1xf32> to vector<2x8x8xf32>
    %233 = arith.subf %229, %232 : vector<2x8x8xf32>
    %234 = math.exp %233 : vector<2x8x8xf32>
    %cst_90 = arith.constant dense<0.000000e+00> : vector<2x8xf32>
    %235 = vector.multi_reduction <add>, %234, %cst_90 [2] : vector<2x8x8xf32> to vector<2x8xf32>
    %236 = vector.shape_cast %235 : vector<2x8xf32> to vector<2x8x1xf32>
    %237 = tpu.reciprocal %236 {approx = true} : vector<2x8x1xf32> -> vector<2x8x1xf32>
    %238 = vector.broadcast %237 : vector<2x8x1xf32> to vector<2x8x8xf32>
    %239 = arith.mulf %234, %238 : vector<2x8x8xf32>
    %240 = arith.truncf %239 : vector<2x8x8xf32> to vector<2x8x8xbf16>
    %241 = arith.truncf %222 : vector<2x8x16xf32> to vector<2x8x16xbf16>
    "tpu.trace_start"() <{level = 10 : i32, message = "bqk,bkd->bqd"}> : () -> ()
    %cst_91 = arith.constant dense<0.000000e+00> : vector<2x8x16xf32>
    %242 = tpu.matmul %240, %241, %cst_91 {dimension_numbers = #tpu.dot_dimension_numbers<[2], [1], [1], [2], [0, 0, 0, 1, 1, 2], [0], [0]>} : vector<2x8x8xbf16>, vector<2x8x16xbf16>, vector<2x8x16xf32> -> vector<2x8x16xf32>
    "tpu.trace_stop"() : () -> ()
    %243 = vector.shape_cast %242 : vector<2x8x16xf32> to vector<16x16xf32>
    %244 = tpu.concatenate %216, %243 in 1 : vector<16x16xf32>, vector<16x16xf32> -> vector<16x32xf32>
    %245 = arith.truncf %244 : vector<16x32xf32> to vector<16x32xbf16>
    %c1_92 = arith.constant 1 : index
    %c0_93 = arith.constant 0 : index
    %c0_94 = arith.constant 0 : index
    %246 = vector.load %arg6[%c1_92, %c0_93, %c0_94] : memref<2x32x32xbf16, #tpu.memory_space<vmem>>, vector<1x32x32xbf16>
    %247 = vector.shape_cast %246 : vector<1x32x32xbf16> to vector<32x32xbf16>
    %cst_95 = arith.constant dense<0.000000e+00> : vector<16x32xf32>
    %248 = tpu.matmul %245, %247, %cst_95 {dimension_numbers = #tpu.dot_dimension_numbers<[1], [0], [0], [1], [0, 0, 1, 1], [], []>} : vector<16x32xbf16>, vector<32x32xbf16>, vector<16x32xf32> -> vector<16x32xf32>
    %c1_96 = arith.constant 1 : index
    %c0_97 = arith.constant 0 : index
    %c0_98 = arith.constant 0 : index
    %249 = vector.load %arg7[%c1_96, %c0_97, %c0_98] : memref<2x1x32xf32, #tpu.memory_space<vmem>>, vector<1x1x32xf32>
    %250 = vector.shape_cast %249 : vector<1x1x32xf32> to vector<1x32xf32>
    %251 = vector.broadcast %250 : vector<1x32xf32> to vector<16x32xf32>
    %252 = arith.addf %248, %251 : vector<16x32xf32>
    %253 = arith.addf %181, %252 : vector<16x32xf32>
    %c1_99 = arith.constant 1 : index
    %c0_100 = arith.constant 0 : index
    %c0_101 = arith.constant 0 : index
    %254 = vector.load %arg8[%c1_99, %c0_100, %c0_101] : memref<2x1x32xf32, #tpu.memory_space<vmem>>, vector<1x1x32xf32>
    %255 = vector.shape_cast %254 : vector<1x1x32xf32> to vector<1x32xf32>
    %c1_102 = arith.constant 1 : index
    %c0_103 = arith.constant 0 : index
    %c0_104 = arith.constant 0 : index
    %256 = vector.load %arg9[%c1_102, %c0_103, %c0_104] : memref<2x1x32xf32, #tpu.memory_space<vmem>>, vector<1x1x32xf32>
    %257 = vector.shape_cast %256 : vector<1x1x32xf32> to vector<1x32xf32>
    %cst_105 = arith.constant dense<0.000000e+00> : vector<16xf32>
    %258 = vector.multi_reduction <add>, %253, %cst_105 [1] : vector<16x32xf32> to vector<16xf32>
    %259 = vector.shape_cast %258 : vector<16xf32> to vector<16x1xf32>
    %cst_106 = arith.constant 3.200000e+01 : f32
    %260 = vector.broadcast %cst_106 : f32 to vector<16x1xf32>
    %261 = arith.divf %259, %260 : vector<16x1xf32>
    %262 = vector.broadcast %261 : vector<16x1xf32> to vector<16x32xf32>
    %263 = arith.subf %253, %262 : vector<16x32xf32>
    %264 = arith.mulf %263, %263 : vector<16x32xf32>
    %cst_107 = arith.constant dense<0.000000e+00> : vector<16xf32>
    %265 = vector.multi_reduction <add>, %264, %cst_107 [1] : vector<16x32xf32> to vector<16xf32>
    %266 = vector.shape_cast %265 : vector<16xf32> to vector<16x1xf32>
    %cst_108 = arith.constant 3.200000e+01 : f32
    %267 = vector.broadcast %cst_108 : f32 to vector<16x1xf32>
    %268 = arith.divf %266, %267 : vector<16x1xf32>
    %269 = vector.broadcast %261 : vector<16x1xf32> to vector<16x32xf32>
    %270 = arith.subf %253, %269 : vector<16x32xf32>
    %cst_109 = arith.constant 9.99999996E-13 : f32
    %271 = vector.broadcast %cst_109 : f32 to vector<16x1xf32>
    %272 = arith.addf %268, %271 : vector<16x1xf32>
    %273 = math.rsqrt %272 : vector<16x1xf32>
    %274 = vector.broadcast %273 : vector<16x1xf32> to vector<16x32xf32>
    %275 = arith.mulf %270, %274 : vector<16x32xf32>
    %276 = vector.broadcast %255 : vector<1x32xf32> to vector<16x32xf32>
    %277 = arith.mulf %275, %276 : vector<16x32xf32>
    %278 = vector.broadcast %257 : vector<1x32xf32> to vector<16x32xf32>
    %279 = arith.addf %277, %278 : vector<16x32xf32>
    %280 = arith.truncf %279 : vector<16x32xf32> to vector<16x32xbf16>
    %c1_110 = arith.constant 1 : index
    %c0_111 = arith.constant 0 : index
    %c0_112 = arith.constant 0 : index
    %281 = vector.load %arg10[%c1_110, %c0_111, %c0_112] : memref<2x32x64xbf16, #tpu.memory_space<vmem>>, vector<1x32x64xbf16>
    %282 = vector.shape_cast %281 : vector<1x32x64xbf16> to vector<32x64xbf16>
    %cst_113 = arith.constant dense<0.000000e+00> : vector<16x64xf32>
    %283 = tpu.matmul %280, %282, %cst_113 {dimension_numbers = #tpu.dot_dimension_numbers<[1], [0], [0], [1], [0, 0, 1, 1], [], []>} : vector<16x32xbf16>, vector<32x64xbf16>, vector<16x64xf32> -> vector<16x64xf32>
    %c1_114 = arith.constant 1 : index
    %c0_115 = arith.constant 0 : index
    %c0_116 = arith.constant 0 : index
    %284 = vector.load %arg11[%c1_114, %c0_115, %c0_116] : memref<2x1x64xf32, #tpu.memory_space<vmem>>, vector<1x1x64xf32>
    %285 = vector.shape_cast %284 : vector<1x1x64xf32> to vector<1x64xf32>
    %286 = vector.broadcast %285 : vector<1x64xf32> to vector<16x64xf32>
    %287 = arith.addf %283, %286 : vector<16x64xf32>
    %cst_117 = arith.constant 5.000000e-01 : f32
    %288 = vector.broadcast %cst_117 : f32 to vector<16x64xf32>
    %289 = arith.mulf %288, %287 : vector<16x64xf32>
    %cst_118 = arith.constant 4.471500e-02 : f32
    %290 = vector.broadcast %cst_118 : f32 to vector<16x64xf32>
    %291 = arith.mulf %290, %287 : vector<16x64xf32>
    %292 = arith.mulf %291, %287 : vector<16x64xf32>
    %293 = arith.mulf %292, %287 : vector<16x64xf32>
    %294 = arith.addf %287, %293 : vector<16x64xf32>
    %cst_119 = arith.constant 0.797884583 : f32
    %295 = vector.broadcast %cst_119 : f32 to vector<16x64xf32>
    %296 = arith.mulf %295, %294 : vector<16x64xf32>
    %297 = math.tanh %296 : vector<16x64xf32>
    %cst_120 = arith.constant 1.000000e+00 : f32
    %298 = vector.broadcast %cst_120 : f32 to vector<16x64xf32>
    %299 = arith.addf %298, %297 : vector<16x64xf32>
    %300 = arith.mulf %289, %299 : vector<16x64xf32>
    %301 = arith.truncf %300 : vector<16x64xf32> to vector<16x64xbf16>
    %c1_121 = arith.constant 1 : index
    %c0_122 = arith.constant 0 : index
    %c0_123 = arith.constant 0 : index
    %302 = vector.load %arg12[%c1_121, %c0_122, %c0_123] : memref<2x64x32xbf16, #tpu.memory_space<vmem>>, vector<1x64x32xbf16>
    %303 = vector.shape_cast %302 : vector<1x64x32xbf16> to vector<64x32xbf16>
    %cst_124 = arith.constant dense<0.000000e+00> : vector<16x32xf32>
    %304 = tpu.matmul %301, %303, %cst_124 {dimension_numbers = #tpu.dot_dimension_numbers<[1], [0], [0], [1], [0, 0, 1, 1], [], []>} : vector<16x64xbf16>, vector<64x32xbf16>, vector<16x32xf32> -> vector<16x32xf32>
    %c1_125 = arith.constant 1 : index
    %c0_126 = arith.constant 0 : index
    %c0_127 = arith.constant 0 : index
    %305 = vector.load %arg13[%c1_125, %c0_126, %c0_127] : memref<2x1x32xf32, #tpu.memory_space<vmem>>, vector<1x1x32xf32>
    %306 = vector.shape_cast %305 : vector<1x1x32xf32> to vector<1x32xf32>
    %307 = vector.broadcast %306 : vector<1x32xf32> to vector<16x32xf32>
    %308 = arith.addf %304, %307 : vector<16x32xf32>
    %309 = arith.addf %279, %308 : vector<16x32xf32>
    %c1_128 = arith.constant 1 : index
    %c0_129 = arith.constant 0 : index
    %c0_130 = arith.constant 0 : index
    %310 = vector.load %arg14[%c1_128, %c0_129, %c0_130] : memref<2x1x32xf32, #tpu.memory_space<vmem>>, vector<1x1x32xf32>
    %311 = vector.shape_cast %310 : vector<1x1x32xf32> to vector<1x32xf32>
    %c1_131 = arith.constant 1 : index
    %c0_132 = arith.constant 0 : index
    %c0_133 = arith.constant 0 : index
    %312 = vector.load %arg15[%c1_131, %c0_132, %c0_133] : memref<2x1x32xf32, #tpu.memory_space<vmem>>, vector<1x1x32xf32>
    %313 = vector.shape_cast %312 : vector<1x1x32xf32> to vector<1x32xf32>
    %cst_134 = arith.constant dense<0.000000e+00> : vector<16xf32>
    %314 = vector.multi_reduction <add>, %309, %cst_134 [1] : vector<16x32xf32> to vector<16xf32>
    %315 = vector.shape_cast %314 : vector<16xf32> to vector<16x1xf32>
    %cst_135 = arith.constant 3.200000e+01 : f32
    %316 = vector.broadcast %cst_135 : f32 to vector<16x1xf32>
    %317 = arith.divf %315, %316 : vector<16x1xf32>
    %318 = vector.broadcast %317 : vector<16x1xf32> to vector<16x32xf32>
    %319 = arith.subf %309, %318 : vector<16x32xf32>
    %320 = arith.mulf %319, %319 : vector<16x32xf32>
    %cst_136 = arith.constant dense<0.000000e+00> : vector<16xf32>
    %321 = vector.multi_reduction <add>, %320, %cst_136 [1] : vector<16x32xf32> to vector<16xf32>
    %322 = vector.shape_cast %321 : vector<16xf32> to vector<16x1xf32>
    %cst_137 = arith.constant 3.200000e+01 : f32
    %323 = vector.broadcast %cst_137 : f32 to vector<16x1xf32>
    %324 = arith.divf %322, %323 : vector<16x1xf32>
    %325 = vector.broadcast %317 : vector<16x1xf32> to vector<16x32xf32>
    %326 = arith.subf %309, %325 : vector<16x32xf32>
    %cst_138 = arith.constant 9.99999996E-13 : f32
    %327 = vector.broadcast %cst_138 : f32 to vector<16x1xf32>
    %328 = arith.addf %324, %327 : vector<16x1xf32>
    %329 = math.rsqrt %328 : vector<16x1xf32>
    %330 = vector.broadcast %329 : vector<16x1xf32> to vector<16x32xf32>
    %331 = arith.mulf %326, %330 : vector<16x32xf32>
    %332 = vector.broadcast %311 : vector<1x32xf32> to vector<16x32xf32>
    %333 = arith.mulf %331, %332 : vector<16x32xf32>
    %334 = vector.broadcast %313 : vector<1x32xf32> to vector<16x32xf32>
    %335 = arith.addf %333, %334 : vector<16x32xf32>
    %336 = vector.shape_cast %335 : vector<16x32xf32> to vector<2x8x32xf32>
    %337 = vector.extract_strided_slice %336 {offsets = [0, 0, 0], sizes = [2, 1, 32], strides = [1, 1, 1]} : vector<2x8x32xf32> to vector<2x1x32xf32>
    %338 = vector.shape_cast %337 : vector<2x1x32xf32> to vector<2x32xf32>
    %339 = arith.truncf %338 : vector<2x32xf32> to vector<2x32xbf16>
    %c0_139 = arith.constant 0 : index
    %c0_140 = arith.constant 0 : index
    %340 = vector.load %arg16[%c0_139, %c0_140] : memref<32x32xbf16, #tpu.memory_space<vmem>>, vector<32x32xbf16>
    %cst_141 = arith.constant dense<0.000000e+00> : vector<2x32xf32>
    %341 = tpu.matmul %339, %340, %cst_141 {dimension_numbers = #tpu.dot_dimension_numbers<[1], [0], [0], [1], [0, 0, 1, 1], [], []>} : vector<2x32xbf16>, vector<32x32xbf16>, vector<2x32xf32> -> vector<2x32xf32>
    %c0_142 = arith.constant 0 : index
    %c0_143 = arith.constant 0 : index
    %342 = vector.load %arg17[%c0_142, %c0_143] : memref<1x32xf32, #tpu.memory_space<vmem>>, vector<1x32xf32>
    %343 = vector.broadcast %342 : vector<1x32xf32> to vector<2x32xf32>
    %344 = arith.addf %341, %343 : vector<2x32xf32>
    %345 = math.tanh %344 : vector<2x32xf32>
    %346 = arith.truncf %345 : vector<2x32xf32> to vector<2x32xbf16>
    %c0_144 = arith.constant 0 : index
    %c0_145 = arith.constant 0 : index
    %347 = vector.load %arg18[%c0_144, %c0_145] : memref<32x128xbf16, #tpu.memory_space<vmem>>, vector<32x128xbf16>
    %cst_146 = arith.constant dense<0.000000e+00> : vector<2x128xf32>
    %348 = tpu.matmul %346, %347, %cst_146 {dimension_numbers = #tpu.dot_dimension_numbers<[1], [0], [0], [1], [0, 0, 1, 1], [], []>} : vector<2x32xbf16>, vector<32x128xbf16>, vector<2x128xf32> -> vector<2x128xf32>
    %c0_147 = arith.constant 0 : index
    %c0_148 = arith.constant 0 : index
    %349 = vector.load %arg19[%c0_147, %c0_148] : memref<1x128xf32, #tpu.memory_space<vmem>>, vector<1x128xf32>
    %350 = vector.broadcast %349 : vector<1x128xf32> to vector<2x128xf32>
    %351 = arith.addf %348, %350 : vector<2x128xf32>
    %c0_149 = arith.constant 0 : index
    %c0_150 = arith.constant 0 : index
    %352 = vector.load %arg22[%c0_149, %c0_150] : memref<2x128xf32, #tpu.memory_space<vmem>>, vector<2x128xf32>
    tpu.vector_store %arg22[%c0_149, %c0_150], %351 {strides = array<i32>} : memref<2x128xf32, #tpu.memory_space<vmem>>, vector<2x128xf32>,
    %353 = vector.extract_strided_slice %351 {offsets = [0, 0], sizes = [2, 2], strides = [1, 1]} : vector<2x128xf32> to vector<2x2xf32>
    %c0_151 = arith.constant 0 : index
    %c0_152 = arith.constant 0 : index
    %354 = vector.load %arg20[%c0_151, %c0_152] : memref<2x2xf32, #tpu.memory_space<vmem>>, vector<2x2xf32>
    %c0_153 = arith.constant 0 : index
    %c0_154 = arith.constant 0 : index
    %355 = vector.load %arg21[%c0_153, %c0_154] : memref<1x2xf32, #tpu.memory_space<vmem>>, vector<1x2xf32>
    %cst_155 = arith.constant 0.000000e+00 : f32
    %356 = vector.broadcast %cst_155 : f32 to vector<2x2xf32>
    %357 = arith.subf %356, %353 : vector<2x2xf32>
    %cst_156 = arith.constant 0.000000e+00 : f32
    %358 = vector.broadcast %cst_156 : f32 to vector<2x2xf32>
    %359 = arith.maximumf %357, %358 : vector<2x2xf32>
    %360 = math.absf %353 : vector<2x2xf32>
    %cst_157 = arith.constant 0.000000e+00 : f32
    %361 = vector.broadcast %cst_157 : f32 to vector<2x2xf32>
    %362 = arith.subf %361, %360 : vector<2x2xf32>
    %363 = math.exp %362 : vector<2x2xf32>
    %cst_158 = arith.constant 1.000000e+00 : f32
    %364 = vector.broadcast %cst_158 : f32 to vector<2x2xf32>
    %365 = arith.addf %364, %363 : vector<2x2xf32>
    %366 = math.log %365 : vector<2x2xf32>
    %367 = arith.addf %359, %366 : vector<2x2xf32>
    %cst_159 = arith.constant 1.000000e+00 : f32
    %368 = vector.broadcast %cst_159 : f32 to vector<2x2xf32>
    %369 = arith.subf %368, %354 : vector<2x2xf32>
    %370 = arith.mulf %369, %353 : vector<2x2xf32>
    %371 = vector.broadcast %355 : vector<1x2xf32> to vector<2x2xf32>
    %372 = arith.mulf %371, %354 : vector<2x2xf32>
    %cst_160 = arith.constant 1.000000e+00 : f32
    %373 = vector.broadcast %cst_160 : f32 to vector<2x2xf32>
    %374 = arith.addf %372, %373 : vector<2x2xf32>
    %375 = arith.subf %374, %354 : vector<2x2xf32>
    %376 = arith.mulf %375, %367 : vector<2x2xf32>
    %377 = arith.addf %370, %376 : vector<2x2xf32>
    %378 = vector.shape_cast %377 : vector<2x2xf32> to vector<1x2x2xf32>
    %cst_161 = arith.constant dense<0.000000e+00> : vector<1xf32>
    %379 = vector.multi_reduction <add>, %378, %cst_161 [1, 2] : vector<1x2x2xf32> to vector<1xf32>
    %380 = vector.shape_cast %379 : vector<1xf32> to vector<1x1x1xf32>
    %381 = vector.extract %380[0, 0, 0] : f32 from vector<1x1x1xf32>
    %382 = vector.broadcast %381 : f32 to vector<1x1xf32>
    %cst_162 = arith.constant 4.000000e+00 : f32
    %383 = vector.broadcast %cst_162 : f32 to vector<1x1xf32>
    %384 = arith.divf %382, %383 : vector<1x1xf32>
    %c0_163 = arith.constant 0 : index
    %c0_164 = arith.constant 0 : index
    %385 = vector.load %arg23[%c0_163, %c0_164] : memref<1x1xf32, #tpu.memory_space<vmem>>, vector<1x1xf32>
    tpu.vector_store %arg23[%c0_163, %c0_164], %384 {strides = array<i32>} : memref<1x1xf32, #tpu.memory_space<vmem>>, vector<1x1xf32>,
    return
  }
}

</mosaic_0001>

<llo_original>
// kernel: _forward_jit.1
$region0: #{_forward_jit.1}
  #allocation0 [shape = 'u32[]', space=smem, size = 0x4, offset = 0x4, fixed_abs, tag = 'smem constant byte address 0x4 - core index']
  #allocation1 [shape = 'u32[144,128]{1,0:T(1,128)}', space=vmem, size = 0x12000, scoped, tag = 'internal scratch']
  %s0 = inlined_call_operand.vmem [shape: f32[2,8,32], index: 0, kind: input, shape index: {}]
  %s1 = inlined_call_operand.vmem [shape: f32[2,8], index: 1, kind: input, shape index: {}]
  %s2 = inlined_call_operand.vmem [shape: f32[1,32], index: 2, kind: input, shape index: {}]
  %s3 = inlined_call_operand.vmem [shape: f32[1,32], index: 3, kind: input, shape index: {}]
  %s4 = inlined_call_operand.vmem [shape: bf16[2,32,96], index: 4, kind: input, shape index: {}]
  %s5 = inlined_call_operand.vmem [shape: f32[2,1,96], index: 5, kind: input, shape index: {}]
  %s6 = inlined_call_operand.vmem [shape: bf16[2,32,32], index: 6, kind: input, shape index: {}]
  %s7 = inlined_call_operand.vmem [shape: f32[2,1,32], index: 7, kind: input, shape index: {}]
  %s8 = inlined_call_operand.vmem [shape: f32[2,1,32], index: 8, kind: input, shape index: {}]
  %s9 = inlined_call_operand.vmem [shape: f32[2,1,32], index: 9, kind: input, shape index: {}]
  %s10 = inlined_call_operand.vmem [shape: bf16[2,32,64], index: 10, kind: input, shape index: {}]
  %s11 = inlined_call_operand.vmem [shape: f32[2,1,64], index: 11, kind: input, shape index: {}]
  %s12 = inlined_call_operand.vmem [shape: bf16[2,64,32], index: 12, kind: input, shape index: {}]
  %s13 = inlined_call_operand.vmem [shape: f32[2,1,32], index: 13, kind: input, shape index: {}]
  %s14 = inlined_call_operand.vmem [shape: f32[2,1,32], index: 14, kind: input, shape index: {}]
  %s15 = inlined_call_operand.vmem [shape: f32[2,1,32], index: 15, kind: input, shape index: {}]
  %s16 = inlined_call_operand.vmem [shape: bf16[32,32], index: 16, kind: input, shape index: {}]
  %s17 = inlined_call_operand.vmem [shape: f32[1,32], index: 17, kind: input, shape index: {}]
  %s18 = inlined_call_operand.vmem [shape: bf16[32,128], index: 18, kind: input, shape index: {}]
  %s19 = inlined_call_operand.vmem [shape: f32[1,128], index: 19, kind: input, shape index: {}]
  %s20 = inlined_call_operand.vmem [shape: f32[2,2], index: 20, kind: input, shape index: {}]
  %s21 = inlined_call_operand.vmem [shape: f32[1,2], index: 21, kind: input, shape index: {}]
  %s22 = inlined_call_operand.hbm [shape: f32[2,128], index: 22, kind: output, shape index: {0}]
  %s23 = inlined_call_operand.hbm [shape: f32[1,1], index: 23, kind: output, shape index: {1}]
  %24 = xla_tuple %s22, %s23
  %s25 = sld [smem:[#allocation0]]
  $region106: #{_forward_jit.1} parent=0
    _
  %s27 = ssub.s32 1, %s25
  %s28 = scalar_select 0, %s27, %s25
  $region1: #{_forward_jit.1} parent=0
    #allocation2 [shape = 'u8[1024]{0}', space=vmem, size = 0x400, scoped, tag = 'output window, operand 0, single buffered']
    #allocation3 [shape = 's32[1]{0}', space=sflag, size = 0x4, scoped, tag = 'scoped memory for _forward_jit.1']
    #allocation4 [shape = 'u8[512]{0}', space=vmem, size = 0x400, scoped, tag = 'output window, operand 1, single buffered']
    #allocation5 [shape = 's32[1]{0}', space=sflag, size = 0x4, scoped, tag = 'scoped memory for _forward_jit.1']
    %29 = vsyncpa [#allocation3], 0
    %30 = vsyncpa [#allocation5], 0
    // Predicated region
    $region2: #{_forward_jit.1} parent=1 // pred_check
      _
    $region3: #{_forward_jit.1} parent=1 // pred_check_branch
      %32 = sbr.rel (0) target = $region5
    $region4: #{_forward_jit.1} parent=1 // pred_region
      _
    $region5: #{_forward_jit.1} parent=1 // pred_fallthru
      _
    // Predicated region
    $region6: #{_forward_jit.1} parent=1 // pred_check
      _
    $region7: #{_forward_jit.1} parent=1 // pred_check_branch
      %34 = sbr.rel (0) target = $region9
    $region8: #{_forward_jit.1} parent=1 // pred_region
      _
    $region9: #{_forward_jit.1} parent=1 // pred_fallthru
      _
    // Predicated region
    $region10: #{_forward_jit.1} parent=1 // pred_check
      _
    $region11: #{_forward_jit.1} parent=1 // pred_check_branch
      %36 = sbr.rel (0) target = $region13
    $region12: #{_forward_jit.1} parent=1 // pred_region
      _
    $region13: #{_forward_jit.1} parent=1 // pred_fallthru
      _
    // Predicated region
    $region14: #{_forward_jit.1} parent=1 // pred_check
      _
    $region15: #{_forward_jit.1} parent=1 // pred_check_branch
      %38 = sbr.rel (0) target = $region17
    $region16: #{_forward_jit.1} parent=1 // pred_region
      _
    $region17: #{_forward_jit.1} parent=1 // pred_fallthru
      _
    // Predicated region
    $region18: #{_forward_jit.1} parent=1 // pred_check
      _
    $region19: #{_forward_jit.1} parent=1 // pred_check_branch
      %40 = sbr.rel (0) target = $region21
    $region20: #{_forward_jit.1} parent=1 // pred_region
      _
    $region21: #{_forward_jit.1} parent=1 // pred_fallthru
      _
    // Predicated region
    $region22: #{_forward_jit.1} parent=1 // pred_check
      _
    $region23: #{_forward_jit.1} parent=1 // pred_check_branch
      %42 = sbr.rel (0) target = $region25
    $region24: #{_forward_jit.1} parent=1 // pred_region
      _
    $region25: #{_forward_jit.1} parent=1 // pred_fallthru
      _
    // Predicated region
    $region26: #{_forward_jit.1} parent=1 // pred_check
      _
    $region27: #{_forward_jit.1} parent=1 // pred_check_branch
      %44 = sbr.rel (0) target = $region29
    $region28: #{_forward_jit.1} parent=1 // pred_region
      _
    $region29: #{_forward_jit.1} parent=1 // pred_fallthru
      _
    // Predicated region
    $region30: #{_forward_jit.1} parent=1 // pred_check
      _
    $region31: #{_forward_jit.1} parent=1 // pred_check_branch
      %46 = sbr.rel (0) target = $region33
    $region32: #{_forward_jit.1} parent=1 // pred_region
      _
    $region33: #{_forward_jit.1} parent=1 // pred_fallthru
      _
    // Predicated region
    $region34: #{_forward_jit.1} parent=1 // pred_check
      _
    $region35: #{_forward_jit.1} parent=1 // pred_check_branch
      %48 = sbr.rel (0) target = $region37
    $region36: #{_forward_jit.1} parent=1 // pred_region
      _
    $region37: #{_forward_jit.1} parent=1 // pred_fallthru
      _
    // Predicated region
    $region38: #{_forward_jit.1} parent=1 // pred_check
      _
    $region39: #{_forward_jit.1} parent=1 // pred_check_branch
      %50 = sbr.rel (0) target = $region41
    $region40: #{_forward_jit.1} parent=1 // pred_region
      _
    $region41: #{_forward_jit.1} parent=1 // pred_fallthru
      _
    // Predicated region
    $region42: #{_forward_jit.1} parent=1 // pred_check
      _
    $region43: #{_forward_jit.1} parent=1 // pred_check_branch
      %52 = sbr.rel (0) target = $region45
    $region44: #{_forward_jit.1} parent=1 // pred_region
      _
    $region45: #{_forward_jit.1} parent=1 // pred_fallthru
      _
    // Predicated region
    $region46: #{_forward_jit.1} parent=1 // pred_check
      _
    $region47: #{_forward_jit.1} parent=1 // pred_check_branch
      %54 = sbr.rel (0) target = $region49
    $region48: #{_forward_jit.1} parent=1 // pred_region
      _
    $region49: #{_forward_jit.1} parent=1 // pred_fallthru
      _
    // Predicated region
    $region50: #{_forward_jit.1} parent=1 // pred_check
      _
    $region51: #{_forward_jit.1} parent=1 // pred_check_branch
      %56 = sbr.rel (0) target = $region53
    $region52: #{_forward_jit.1} parent=1 // pred_region
      _
    $region53: #{_forward_jit.1} parent=1 // pred_fallthru
      _
    // Predicated region
    $region54: #{_forward_jit.1} parent=1 // pred_check
      _
    $region55: #{_forward_jit.1} parent=1 // pred_check_branch
      %58 = sbr.rel (0) target = $region57
    $region56: #{_forward_jit.1} parent=1 // pred_region
      _
    $region57: #{_forward_jit.1} parent=1 // pred_fallthru
      _
    // Predicated region
    $region58: #{_forward_jit.1} parent=1 // pred_check
      _
    $region59: #{_forward_jit.1} parent=1 // pred_check_branch
      %60 = sbr.rel (0) target = $region61
    $region60: #{_forward_jit.1} parent=1 // pred_region
      _
    $region61: #{_forward_jit.1} parent=1 // pred_fallthru
      _
    // Predicated region
    $region62: #{_forward_jit.1} parent=1 // pred_check
      _
    $region63: #{_forward_jit.1} parent=1 // pred_check_branch
      %62 = sbr.rel (0) target = $region65
    $region64: #{_forward_jit.1} parent=1 // pred_region
      _
    $region65: #{_forward_jit.1} parent=1 // pred_fallthru
      _
    // Predicated region
    $region66: #{_forward_jit.1} parent=1 // pred_check
      _
    $region67: #{_forward_jit.1} parent=1 // pred_check_branch
      %64 = sbr.rel (0) target = $region69
    $region68: #{_forward_jit.1} parent=1 // pred_region
      _
    $region69: #{_forward_jit.1} parent=1 // pred_fallthru
      _
    // Predicated region
    $region70: #{_forward_jit.1} parent=1 // pred_check
      _
    $region71: #{_forward_jit.1} parent=1 // pred_check_branch
      %66 = sbr.rel (0) target = $region73
    $region72: #{_forward_jit.1} parent=1 // pred_region
      _
    $region73: #{_forward_jit.1} parent=1 // pred_fallthru
      _
    // Predicated region
    $region74: #{_forward_jit.1} parent=1 // pred_check
      _
    $region75: #{_forward_jit.1} parent=1 // pred_check_branch
      %68 = sbr.rel (0) target = $region77
    $region76: #{_forward_jit.1} parent=1 // pred_region
      _
    $region77: #{_forward_jit.1} parent=1 // pred_fallthru
      _
    // Predicated region
    $region78: #{_forward_jit.1} parent=1 // pred_check
      _
    $region79: #{_forward_jit.1} parent=1 // pred_check_branch
      %70 = sbr.rel (0) target = $region81
    $region80: #{_forward_jit.1} parent=1 // pred_region
      _
    $region81: #{_forward_jit.1} parent=1 // pred_fallthru
      _
    // Predicated region
    $region82: #{_forward_jit.1} parent=1 // pred_check
      _
    $region83: #{_forward_jit.1} parent=1 // pred_check_branch
      %72 = sbr.rel (0) target = $region85
    $region84: #{_forward_jit.1} parent=1 // pred_region
      _
    $region85: #{_forward_jit.1} parent=1 // pred_fallthru
      _
    // Predicated region
    $region86: #{_forward_jit.1} parent=1 // pred_check
      _
    $region87: #{_forward_jit.1} parent=1 // pred_check_branch
      %74 = sbr.rel (0) target = $region89
    $region88: #{_forward_jit.1} parent=1 // pred_region
      _
    $region89: #{_forward_jit.1} parent=1 // pred_fallthru
      _
    %v76 = vld [vmem:[%s0] sm:$0xff]
    %v77 = vld [vmem:[%s0 + $0x8] sm:$0xff]
    %v78 = vld [vmem:[%s2] sm:$0x1]
    %v79 = vld [vmem:[%s3] sm:$0x1]
    %vm80 = vcmask 261120
    %v81 = vsel %vm80, %v76, 0.0
    %82 = vadd.xlane.f32.xlu0 %v81
    %v83 = vpop.xlane.xlu0 %82
    %v84 = vsel %vm80, %v77, 0.0
    %85 = vadd.xlane.f32.xlu0 %v84
    %v86 = vpop.xlane.xlu0 %85
    %v87 = vrcp.pop 32.0
    %v88 = vmul.f32 %v83, %v87
    %v89 = vmul.f32 %v86, %v87
    %v90 = vsub.f32 %v76, %v88
    %v91 = vsub.f32 %v77, %v89
    %v92 = vmul.f32 %v90, %v90
    %v93 = vmul.f32 %v91, %v91
    %v94 = vsel %vm80, %v92, 0.0
    %95 = vadd.xlane.f32.xlu0 %v94
    %v96 = vpop.xlane.xlu0 %95
    %v97 = vsel %vm80, %v93, 0.0
    %98 = vadd.xlane.f32.xlu0 %v97
    %v99 = vpop.xlane.xlu0 %98
    %v100 = vmul.f32 %v96, %v87
    %v101 = vmul.f32 %v99, %v87
    %v102 = vadd.f32 %v100, 1e-12
    %v103 = vadd.f32 %v101, 1e-12
    %v104 = vrsqrt.pop %v102
    %v105 = vrsqrt.pop %v103
    %v106 = vmul.f32 %v90, %v104
    %v107 = vmul.f32 %v91, %v105
    %v109 = vlaneseq
    %v110 = vshrl.u32 %v109, 7
    %v111 = vsub.s32 0, %v110
    %v112 = vrot.slane %v78, %v111
    %v114 = vmul.f32 %v106, %v112
    %v115 = vmul.f32 %v107, %v112
    %v117 = vlaneseq
    %v118 = vshrl.u32 %v117, 7
    %v119 = vsub.s32 0, %v118
    %v120 = vrot.slane %v79, %v119
    %v122 = vadd.f32 %v114, %v120
    %v123 = vadd.f32 %v115, %v120
    %v124 = vld [vmem:[%s1] sm:$0x3]
    %v127 = vunpack.c.l.s4 1966171168
    %v128 = vunpack.c.0.s8 %v127
    %v129 = vlaneseq
    %v130 = vshrl.u32 %v129, 7
    %v131 = vsub.s32 %v128, %v130
    %v132 = vrot.slane %v124, %v131
    %v133 = vcombine.high %v132, %v132
    %v135 = vunpack.c.l.s4 1966171168
    %v136 = vunpack.c.0.s8 %v135
    %v137 = vlaneseq
    %v138 = vshrl.u32 %v137, 7
    %v139 = vsub.s32 %v136, %v138
    %v140 = vrot.slane %v132, %v139
    %v142 = vunpack.c.l.s4 1966171168
    %v143 = vunpack.c.0.s8 %v142
    %v144 = vlaneseq
    %v145 = vshrl.u32 %v144, 7
    %v146 = vsub.s32 %v143, %v145
    %v147 = vrot.slane %v133, %v146
    %v148 = vpack.c.bf16 %v123, %v122
    %v149 = vld [vmem:[%s4] sm:$0xf]
    %v150 = vld [vmem:[%s4 + $0x4] sm:$0xf]
    %v151 = vld [vmem:[%s4 + $0x8] sm:$0xf]
    %v152 = vld [vmem:[%s4 + $0xc] sm:$0xf]
    %v153 = vld [vmem:[%s5] sm:$0x1]
    %v155 = vlaneseq
    %v156 = vshrl.u32 %v155, 7
    %v157 = vsub.s32 0, %v156
    %v158 = vrot.slane %v153, %v157
    %v164 = vunpack.c.l.b16 %v149
    %v165 = vunpack.c.l.b16 %v150
    %v166 = vunpack.c.l.b16 %v151
    %v167 = vunpack.c.l.b16 %v152
    %v168 = vpack.c.b16 %v165, %v164
    %v169 = vpack.c.b16 %v167, %v166
    %v173 = vsel %vm80, %v148, 0
    %175 = vmatprep.subr.bf16.mxu0 0
    %176 = vmatpush1.bf16.msra.mxu0 %v168
    %177 = vmatprep.subr.bf16.mxu0 0
    %178 = vmatpush1.bf16.msra.mxu0 %v169
    %179 = vmatprep.subr.bf16.mxu0 0
    %180 = vmatpush1.bf16.msra.mxu0 0
    %181 = vmatprep.subr.bf16.mxu0 0
    %182 = vmatpush1.bf16.msra.mxu0 0
    %183 = vmatprep.subr.bf16.mxu0 0
    %184 = vmatpush1.bf16.msra.mxu0 0
    %185 = vmatprep.subr.bf16.mxu0 0
    %186 = vmatpush1.bf16.msra.mxu0 0
    %187 = vmatprep.subr.bf16.mxu0 0
    %188 = vmatpush1.bf16.msra.mxu0 0
    %189 = vmatprep.subr.bf16.mxu0 0
    %190 = vmatpush1.bf16.msra.mxu0 0
    %191 = vmatprep.subr.bf16.mxu0 0
    %192 = vmatpush1.bf16.msra.mxu0 0
    %193 = vmatprep.subr.bf16.mxu0 0
    %194 = vmatpush1.bf16.msra.mxu0 0
    %195 = vmatprep.subr.bf16.mxu0 0
    %196 = vmatpush1.bf16.msra.mxu0 0
    %197 = vmatprep.subr.bf16.mxu0 0
    %198 = vmatpush1.bf16.msra.mxu0 0
    %199 = vmatprep.subr.bf16.mxu0 0
    %200 = vmatpush1.bf16.msra.mxu0 0
    %201 = vmatprep.subr.bf16.mxu0 0
    %202 = vmatpush1.bf16.msra.mxu0 0
    %203 = vmatprep.subr.bf16.mxu0 0
    %204 = vmatpush1.bf16.msra.mxu0 0
    %205 = vmatprep.subr.bf16.mxu0 0
    %206 = vmatpush1.bf16.msra.mxu0 0
    %207 = vmatprep.mubr.bf16.mxu0 0
    %208 = vmatmul.mubr.bf16.gmra.mrb[0].mxu0 %v173
    %v209 = vpop.f32.mrb[0].mxu0
    %v210 = vadd.f32 %v158, %v209
    %v211 = vpop.f32.mrb[0].mxu0
    %v212 = vpop.f32.mrb[0].mxu0
    %v213 = vadd.f32 %v158, %v212
    %v214 = vpop.f32.mrb[0].mxu0
    %215 = vdwg.mxu0
    %v216 = vpack.c.bf16 %v210, %v210
    %v217 = vpack.c.bf16 %v213, %v213
    %219 = vrot.lane.b32.xlu0 %v216, 96
    %v220 = vpop.permute.xlu0 %219
    %vm221 = vcmask 130048
    %v223 = vsel %vm221, %v216, 0
    %v226 = vsel %vm221, %v220, 0
    %228 = vmatprep.subr.bf16.mxu0 0
    %229 = vmatpush1.bf16.xpose.msra.mxu0 %v226
    %230 = vmatprep.subr.bf16.mxu0 0
    %231 = vmatpush1.bf16.xpose.msra.mxu0 0
    %232 = vmatprep.subr.bf16.mxu0 0
    %233 = vmatpush1.bf16.xpose.msra.mxu0 0
    %234 = vmatprep.subr.bf16.mxu0 0
    %235 = vmatpush1.bf16.xpose.msra.mxu0 0
    %236 = vmatprep.subr.bf16.mxu0 0
    %237 = vmatpush1.bf16.xpose.msra.mxu0 0
    %238 = vmatprep.subr.bf16.mxu0 0
    %239 = vmatpush1.bf16.xpose.msra.mxu0 0
    %240 = vmatprep.subr.bf16.mxu0 0
    %241 = vmatpush1.bf16.xpose.msra.mxu0 0
    %242 = vmatprep.subr.bf16.mxu0 0
    %243 = vmatpush1.bf16.xpose.msra.mxu0 0
    %244 = vmatprep.subr.bf16.mxu0 0
    %245 = vmatpush1.bf16.xpose.msra.mxu0 0
    %246 = vmatprep.subr.bf16.mxu0 0
    %247 = vmatpush1.bf16.xpose.msra.mxu0 0
    %248 = vmatprep.subr.bf16.mxu0 0
    %249 = vmatpush1.bf16.xpose.msra.mxu0 0
    %250 = vmatprep.subr.bf16.mxu0 0
    %251 = vmatpush1.bf16.xpose.msra.mxu0 0
    %252 = vmatprep.subr.bf16.mxu0 0
    %253 = vmatpush1.bf16.xpose.msra.mxu0 0
    %254 = vmatprep.subr.bf16.mxu0 0
    %255 = vmatpush1.bf16.xpose.msra.mxu0 0
    %256 = vmatprep.subr.bf16.mxu0 0
    %257 = vmatpush1.bf16.xpose.msra.mxu0 0
    %258 = vmatprep.subr.bf16.mxu0 0
    %259 = vmatpush1.bf16.xpose.msra.mxu0 0
    %260 = vmatprep.mubr.bf16.mxu0 0
    %261 = vmatmul.mubr.bf16.gmra.mrb[0].mxu0 %v223
    %v262 = vpop.f32.mrb[0].mxu0
    %v263 = vadd.f32 0.0, %v262
    %v264 = vpop.f32.mrb[0].mxu0
    %v265 = vpop.f32.mrb[0].mxu0
    %v266 = vpop.f32.mrb[0].mxu0
    %267 = vdwg.mxu0
    %269 = vrot.lane.b32.xlu0 %v217, 96
    %v270 = vpop.permute.xlu0 %269
    %v272 = vsel %vm221, %v217, 0
    %v275 = vsel %vm221, %v270, 0
    %277 = vmatprep.subr.bf16.mxu0 0
    %278 = vmatpush1.bf16.xpose.msra.mxu0 %v275
    %279 = vmatprep.subr.bf16.mxu0 0
    %280 = vmatpush1.bf16.xpose.msra.mxu0 0
    %281 = vmatprep.subr.bf16.mxu0 0
    %282 = vmatpush1.bf16.xpose.msra.mxu0 0
    %283 = vmatprep.subr.bf16.mxu0 0
    %284 = vmatpush1.bf16.xpose.msra.mxu0 0
    %285 = vmatprep.subr.bf16.mxu0 0
    %286 = vmatpush1.bf16.xpose.msra.mxu0 0
    %287 = vmatprep.subr.bf16.mxu0 0
    %288 = vmatpush1.bf16.xpose.msra.mxu0 0
    %289 = vmatprep.subr.bf16.mxu0 0
    %290 = vmatpush1.bf16.xpose.msra.mxu0 0
    %291 = vmatprep.subr.bf16.mxu0 0
    %292 = vmatpush1.bf16.xpose.msra.mxu0 0
    %293 = vmatprep.subr.bf16.mxu0 0
    %294 = vmatpush1.bf16.xpose.msra.mxu0 0
    %295 = vmatprep.subr.bf16.mxu0 0
    %296 = vmatpush1.bf16.xpose.msra.mxu0 0
    %297 = vmatprep.subr.bf16.mxu0 0
    %298 = vmatpush1.bf16.xpose.msra.mxu0 0
    %299 = vmatprep.subr.bf16.mxu0 0
    %300 = vmatpush1.bf16.xpose.msra.mxu0 0
    %301 = vmatprep.subr.bf16.mxu0 0
    %302 = vmatpush1.bf16.xpose.msra.mxu0 0
    %303 = vmatprep.subr.bf16.mxu0 0
    %304 = vmatpush1.bf16.xpose.msra.mxu0 0
    %305 = vmatprep.subr.bf16.mxu0 0
    %306 = vmatpush1.bf16.xpose.msra.mxu0 0
    %307 = vmatprep.subr.bf16.mxu0 0
    %308 = vmatpush1.bf16.xpose.msra.mxu0 0
    %309 = vmatprep.mubr.bf16.mxu0 0
    %310 = vmatmul.mubr.bf16.gmra.mrb[0].mxu0 %v272
    %v311 = vpop.f32.mrb[0].mxu0
    %v312 = vadd.f32 0.0, %v311
    %v313 = vpop.f32.mrb[0].mxu0
    %v314 = vpop.f32.mrb[0].mxu0
    %v315 = vpop.f32.mrb[0].mxu0
    %316 = vdwg.mxu0
    %v317 = vmul.f32 %v263, 0.25
    %v318 = vmul.f32 %v312, 0.25
    %v319 = vlaneseq
    %v320 = vshrl.u32 %v319, 7
    %v321 = vsub.s32 0, %v320
    %v322 = vrot.slane %v140, %v321
    %v323 = vlaneseq
    %v324 = vshrl.u32 %v323, 7
    %v325 = vsub.s32 0, %v324
    %v326 = vrot.slane %v147, %v325
    %v329 = vadd.f32 %v317, %v322
    %v330 = vadd.f32 %v318, %v326
    %vm331 = vcmask 64512
    %v332 = vsel %vm331, %v329, -inf
    %333 = vmax.xlane.f32.xlu0 %v332
    %v334 = vpop.xlane.xlu0 %333
    %v335 = vsel %vm331, %v330, -inf
    %336 = vmax.xlane.f32.xlu0 %v335
    %v337 = vpop.xlane.xlu0 %336
    %v338 = vsub.f32 %v329, %v334
    %v339 = vsub.f32 %v330, %v337
    %v340 = vmul.f32 %v338, 1.442695
    %v341 = vpow.pop %v340
    %v342 = vmul.f32 %v339, 1.442695
    %v343 = vpow.pop %v342
    %v344 = vsel %vm331, %v341, 0.0
    %345 = vadd.xlane.f32.xlu0 %v344
    %v346 = vpop.xlane.xlu0 %345
    %v347 = vsel %vm331, %v343, 0.0
    %348 = vadd.xlane.f32.xlu0 %v347
    %v349 = vpop.xlane.xlu0 %348
    %v350 = vrcp.pop %v346
    %v351 = vrcp.pop %v349
    %v352 = vmul.f32 %v341, %v350
    %v353 = vmul.f32 %v343, %v351
    %v354 = vpack.c.bf16 %v352, %v352
    %v355 = vpack.c.bf16 %v353, %v353
    %356 = vrot.lane.b32.xlu0 %v216, 64
    %v357 = vpop.permute.xlu0 %356
    %v359 = vsel %vm331, %v354, 0
    %vm361 = vcmask 1043456
    %v363 = vsel %vm361, %v357, 0
    %365 = vmatprep.subr.bf16.mxu0 0
    %366 = vmatpush1.bf16.msra.mxu0 %v363
    %367 = vmatprep.subr.bf16.mxu0 0
    %368 = vmatpush1.bf16.msra.mxu0 0
    %369 = vmatprep.subr.bf16.mxu0 0
    %370 = vmatpush1.bf16.msra.mxu0 0
    %371 = vmatprep.subr.bf16.mxu0 0
    %372 = vmatpush1.bf16.msra.mxu0 0
    %373 = vmatprep.subr.bf16.mxu0 0
    %374 = vmatpush1.bf16.msra.mxu0 0
    %375 = vmatprep.subr.bf16.mxu0 0
    %376 = vmatpush1.bf16.msra.mxu0 0
    %377 = vmatprep.subr.bf16.mxu0 0
    %378 = vmatpush1.bf16.msra.mxu0 0
    %379 = vmatprep.subr.bf16.mxu0 0
    %380 = vmatpush1.bf16.msra.mxu0 0
    %381 = vmatprep.subr.bf16.mxu0 0
    %382 = vmatpush1.bf16.msra.mxu0 0
    %383 = vmatprep.subr.bf16.mxu0 0
    %384 = vmatpush1.bf16.msra.mxu0 0
    %385 = vmatprep.subr.bf16.mxu0 0
    %386 = vmatpush1.bf16.msra.mxu0 0
    %387 = vmatprep.subr.bf16.mxu0 0
    %388 = vmatpush1.bf16.msra.mxu0 0
    %389 = vmatprep.subr.bf16.mxu0 0
    %390 = vmatpush1.bf16.msra.mxu0 0
    %391 = vmatprep.subr.bf16.mxu0 0
    %392 = vmatpush1.bf16.msra.mxu0 0
    %393 = vmatprep.subr.bf16.mxu0 0
    %394 = vmatpush1.bf16.msra.mxu0 0
    %395 = vmatprep.subr.bf16.mxu0 0
    %396 = vmatpush1.bf16.msra.mxu0 0
    %397 = vmatprep.mubr.bf16.mxu0 0
    %398 = vmatmul.mubr.bf16.gmra.mrb[0].mxu0 %v359
    %v399 = vpop.f32.mrb[0].mxu0
    %v400 = vadd.f32 0.0, %v399
    %v401 = vpop.f32.mrb[0].mxu0
    %v402 = vpop.f32.mrb[0].mxu0
    %v403 = vpop.f32.mrb[0].mxu0
    %404 = vdwg.mxu0
    %405 = vrot.lane.b32.xlu0 %v217, 64
    %v406 = vpop.permute.xlu0 %405
    %v408 = vsel %vm331, %v355, 0
    %v411 = vsel %vm361, %v406, 0
    %413 = vmatprep.subr.bf16.mxu0 0
    %414 = vmatpush1.bf16.msra.mxu0 %v411
    %415 = vmatprep.subr.bf16.mxu0 0
    %416 = vmatpush1.bf16.msra.mxu0 0
    %417 = vmatprep.subr.bf16.mxu0 0
    %418 = vmatpush1.bf16.msra.mxu0 0
    %419 = vmatprep.subr.bf16.mxu0 0
    %420 = vmatpush1.bf16.msra.mxu0 0
    %421 = vmatprep.subr.bf16.mxu0 0
    %422 = vmatpush1.bf16.msra.mxu0 0
    %423 = vmatprep.subr.bf16.mxu0 0
    %424 = vmatpush1.bf16.msra.mxu0 0
    %425 = vmatprep.subr.bf16.mxu0 0
    %426 = vmatpush1.bf16.msra.mxu0 0
    %427 = vmatprep.subr.bf16.mxu0 0
    %428 = vmatpush1.bf16.msra.mxu0 0
    %429 = vmatprep.subr.bf16.mxu0 0
    %430 = vmatpush1.bf16.msra.mxu0 0
    %431 = vmatprep.subr.bf16.mxu0 0
    %432 = vmatpush1.bf16.msra.mxu0 0
    %433 = vmatprep.subr.bf16.mxu0 0
    %434 = vmatpush1.bf16.msra.mxu0 0
    %435 = vmatprep.subr.bf16.mxu0 0
    %436 = vmatpush1.bf16.msra.mxu0 0
    %437 = vmatprep.subr.bf16.mxu0 0
    %438 = vmatpush1.bf16.msra.mxu0 0
    %439 = vmatprep.subr.bf16.mxu0 0
    %440 = vmatpush1.bf16.msra.mxu0 0
    %441 = vmatprep.subr.bf16.mxu0 0
    %442 = vmatpush1.bf16.msra.mxu0 0
    %443 = vmatprep.subr.bf16.mxu0 0
    %444 = vmatpush1.bf16.msra.mxu0 0
    %445 = vmatprep.mubr.bf16.mxu0 0
    %446 = vmatmul.mubr.bf16.gmra.mrb[0].mxu0 %v408
    %v447 = vpop.f32.mrb[0].mxu0
    %v448 = vadd.f32 0.0, %v447
    %v449 = vpop.f32.mrb[0].mxu0
    %v450 = vpop.f32.mrb[0].mxu0
    %v451 = vpop.f32.mrb[0].mxu0
    %452 = vdwg.mxu0
    %453 = vrot.lane.b32.xlu0 %v216, 112
    %v454 = vpop.permute.xlu0 %453
    %455 = vrot.lane.b32.xlu0 %v216, 80
    %v456 = vpop.permute.xlu0 %455
    %v458 = vsel %vm221, %v454, 0
    %v461 = vsel %vm221, %v456, 0
    %463 = vmatprep.subr.bf16.mxu0 0
    %464 = vmatpush1.bf16.xpose.msra.mxu0 %v461
    %465 = vmatprep.subr.bf16.mxu0 0
    %466 = vmatpush1.bf16.xpose.msra.mxu0 0
    %467 = vmatprep.subr.bf16.mxu0 0
    %468 = vmatpush1.bf16.xpose.msra.mxu0 0
    %469 = vmatprep.subr.bf16.mxu0 0
    %470 = vmatpush1.bf16.xpose.msra.mxu0 0
    %471 = vmatprep.subr.bf16.mxu0 0
    %472 = vmatpush1.bf16.xpose.msra.mxu0 0
    %473 = vmatprep.subr.bf16.mxu0 0
    %474 = vmatpush1.bf16.xpose.msra.mxu0 0
    %475 = vmatprep.subr.bf16.mxu0 0
    %476 = vmatpush1.bf16.xpose.msra.mxu0 0
    %477 = vmatprep.subr.bf16.mxu0 0
    %478 = vmatpush1.bf16.xpose.msra.mxu0 0
    %479 = vmatprep.subr.bf16.mxu0 0
    %480 = vmatpush1.bf16.xpose.msra.mxu0 0
    %481 = vmatprep.subr.bf16.mxu0 0
    %482 = vmatpush1.bf16.xpose.msra.mxu0 0
    %483 = vmatprep.subr.bf16.mxu0 0
    %484 = vmatpush1.bf16.xpose.msra.mxu0 0
    %485 = vmatprep.subr.bf16.mxu0 0
    %486 = vmatpush1.bf16.xpose.msra.mxu0 0
    %487 = vmatprep.subr.bf16.mxu0 0
    %488 = vmatpush1.bf16.xpose.msra.mxu0 0
    %489 = vmatprep.subr.bf16.mxu0 0
    %490 = vmatpush1.bf16.xpose.msra.mxu0 0
    %491 = vmatprep.subr.bf16.mxu0 0
    %492 = vmatpush1.bf16.xpose.msra.mxu0 0
    %493 = vmatprep.subr.bf16.mxu0 0
    %494 = vmatpush1.bf16.xpose.msra.mxu0 0
    %495 = vmatprep.mubr.bf16.mxu0 0
    %496 = vmatmul.mubr.bf16.gmra.mrb[0].mxu0 %v458
    %v497 = vpop.f32.mrb[0].mxu0
    %v498 = vadd.f32 0.0, %v497
    %v499 = vpop.f32.mrb[0].mxu0
    %v500 = vpop.f32.mrb[0].mxu0
    %v501 = vpop.f32.mrb[0].mxu0
    %502 = vdwg.mxu0
    %503 = vrot.lane.b32.xlu0 %v217, 112
    %v504 = vpop.permute.xlu0 %503
    %505 = vrot.lane.b32.xlu0 %v217, 80
    %v506 = vpop.permute.xlu0 %505
    %v508 = vsel %vm221, %v504, 0
    %v511 = vsel %vm221, %v506, 0
    %513 = vmatprep.subr.bf16.mxu0 0
    %514 = vmatpush1.bf16.xpose.msra.mxu0 %v511
    %515 = vmatprep.subr.bf16.mxu0 0
    %516 = vmatpush1.bf16.xpose.msra.mxu0 0
    %517 = vmatprep.subr.bf16.mxu0 0
    %518 = vmatpush1.bf16.xpose.msra.mxu0 0
    %519 = vmatprep.subr.bf16.mxu0 0
    %520 = vmatpush1.bf16.xpose.msra.mxu0 0
    %521 = vmatprep.subr.bf16.mxu0 0
    %522 = vmatpush1.bf16.xpose.msra.mxu0 0
    %523 = vmatprep.subr.bf16.mxu0 0
    %524 = vmatpush1.bf16.xpose.msra.mxu0 0
    %525 = vmatprep.subr.bf16.mxu0 0
    %526 = vmatpush1.bf16.xpose.msra.mxu0 0
    %527 = vmatprep.subr.bf16.mxu0 0
    %528 = vmatpush1.bf16.xpose.msra.mxu0 0
    %529 = vmatprep.subr.bf16.mxu0 0
    %530 = vmatpush1.bf16.xpose.msra.mxu0 0
    %531 = vmatprep.subr.bf16.mxu0 0
    %532 = vmatpush1.bf16.xpose.msra.mxu0 0
    %533 = vmatprep.subr.bf16.mxu0 0
    %534 = vmatpush1.bf16.xpose.msra.mxu0 0
    %535 = vmatprep.subr.bf16.mxu0 0
    %536 = vmatpush1.bf16.xpose.msra.mxu0 0
    %537 = vmatprep.subr.bf16.mxu0 0
    %538 = vmatpush1.bf16.xpose.msra.mxu0 0
    %539 = vmatprep.subr.bf16.mxu0 0
    %540 = vmatpush1.bf16.xpose.msra.mxu0 0
    %541 = vmatprep.subr.bf16.mxu0 0
    %542 = vmatpush1.bf16.xpose.msra.mxu0 0
    %543 = vmatprep.subr.bf16.mxu0 0
    %544 = vmatpush1.bf16.xpose.msra.mxu0 0
    %545 = vmatprep.mubr.bf16.mxu0 0
    %546 = vmatmul.mubr.bf16.gmra.mrb[0].mxu0 %v508
    %v547 = vpop.f32.mrb[0].mxu0
    %v548 = vadd.f32 0.0, %v547
    %v549 = vpop.f32.mrb[0].mxu0
    %v550 = vpop.f32.mrb[0].mxu0
    %v551 = vpop.f32.mrb[0].mxu0
    %552 = vdwg.mxu0
    %v553 = vmul.f32 %v498, 0.25
    %v554 = vmul.f32 %v548, 0.25
    %v555 = vadd.f32 %v553, %v322
    %v556 = vadd.f32 %v554, %v326
    %v557 = vsel %vm331, %v555, -inf
    %558 = vmax.xlane.f32.xlu0 %v557
    %v559 = vpop.xlane.xlu0 %558
    %v560 = vsel %vm331, %v556, -inf
    %561 = vmax.xlane.f32.xlu0 %v560
    %v562 = vpop.xlane.xlu0 %561
    %v563 = vsub.f32 %v555, %v559
    %v564 = vsub.f32 %v556, %v562
    %v565 = vmul.f32 %v563, 1.442695
    %v566 = vpow.pop %v565
    %v567 = vmul.f32 %v564, 1.442695
    %v568 = vpow.pop %v567
    %v569 = vsel %vm331, %v566, 0.0
    %570 = vadd.xlane.f32.xlu0 %v569
    %v571 = vpop.xlane.xlu0 %570
    %v572 = vsel %vm331, %v568, 0.0
    %573 = vadd.xlane.f32.xlu0 %v572
    %v574 = vpop.xlane.xlu0 %573
    %v575 = vrcp.pop %v571
    %v576 = vrcp.pop %v574
    %v577 = vmul.f32 %v566, %v575
    %v578 = vmul.f32 %v568, %v576
    %v579 = vpack.c.bf16 %v577, %v577
    %v580 = vpack.c.bf16 %v578, %v578
    %581 = vrot.lane.b32.xlu0 %v216, 48
    %v582 = vpop.permute.xlu0 %581
    %v584 = vsel %vm331, %v579, 0
    %v587 = vsel %vm361, %v582, 0
    %589 = vmatprep.subr.bf16.mxu0 0
    %590 = vmatpush1.bf16.msra.mxu0 %v587
    %591 = vmatprep.subr.bf16.mxu0 0
    %592 = vmatpush1.bf16.msra.mxu0 0
    %593 = vmatprep.subr.bf16.mxu0 0
    %594 = vmatpush1.bf16.msra.mxu0 0
    %595 = vmatprep.subr.bf16.mxu0 0
    %596 = vmatpush1.bf16.msra.mxu0 0
    %597 = vmatprep.subr.bf16.mxu0 0
    %598 = vmatpush1.bf16.msra.mxu0 0
    %599 = vmatprep.subr.bf16.mxu0 0
    %600 = vmatpush1.bf16.msra.mxu0 0
    %601 = vmatprep.subr.bf16.mxu0 0
    %602 = vmatpush1.bf16.msra.mxu0 0
    %603 = vmatprep.subr.bf16.mxu0 0
    %604 = vmatpush1.bf16.msra.mxu0 0
    %605 = vmatprep.subr.bf16.mxu0 0
    %606 = vmatpush1.bf16.msra.mxu0 0
    %607 = vmatprep.subr.bf16.mxu0 0
    %608 = vmatpush1.bf16.msra.mxu0 0
    %609 = vmatprep.subr.bf16.mxu0 0
    %610 = vmatpush1.bf16.msra.mxu0 0
    %611 = vmatprep.subr.bf16.mxu0 0
    %612 = vmatpush1.bf16.msra.mxu0 0
    %613 = vmatprep.subr.bf16.mxu0 0
    %614 = vmatpush1.bf16.msra.mxu0 0
    %615 = vmatprep.subr.bf16.mxu0 0
    %616 = vmatpush1.bf16.msra.mxu0 0
    %617 = vmatprep.subr.bf16.mxu0 0
    %618 = vmatpush1.bf16.msra.mxu0 0
    %619 = vmatprep.subr.bf16.mxu0 0
    %620 = vmatpush1.bf16.msra.mxu0 0
    %621 = vmatprep.mubr.bf16.mxu0 0
    %622 = vmatmul.mubr.bf16.gmra.mrb[0].mxu0 %v584
    %v623 = vpop.f32.mrb[0].mxu0
    %v624 = vadd.f32 0.0, %v623
    %v625 = vpop.f32.mrb[0].mxu0
    %v626 = vpop.f32.mrb[0].mxu0
    %v627 = vpop.f32.mrb[0].mxu0
    %628 = vdwg.mxu0
    %629 = vrot.lane.b32.xlu0 %v217, 48
    %v630 = vpop.permute.xlu0 %629
    %v632 = vsel %vm331, %v580, 0
    %v635 = vsel %vm361, %v630, 0
    %637 = vmatprep.subr.bf16.mxu0 0
    %638 = vmatpush1.bf16.msra.mxu0 %v635
    %639 = vmatprep.subr.bf16.mxu0 0
    %640 = vmatpush1.bf16.msra.mxu0 0
    %641 = vmatprep.subr.bf16.mxu0 0
    %642 = vmatpush1.bf16.msra.mxu0 0
    %643 = vmatprep.subr.bf16.mxu0 0
    %644 = vmatpush1.bf16.msra.mxu0 0
    %645 = vmatprep.subr.bf16.mxu0 0
    %646 = vmatpush1.bf16.msra.mxu0 0
    %647 = vmatprep.subr.bf16.mxu0 0
    %648 = vmatpush1.bf16.msra.mxu0 0
    %649 = vmatprep.subr.bf16.mxu0 0
    %650 = vmatpush1.bf16.msra.mxu0 0
    %651 = vmatprep.subr.bf16.mxu0 0
    %652 = vmatpush1.bf16.msra.mxu0 0
    %653 = vmatprep.subr.bf16.mxu0 0
    %654 = vmatpush1.bf16.msra.mxu0 0
    %655 = vmatprep.subr.bf16.mxu0 0
    %656 = vmatpush1.bf16.msra.mxu0 0
    %657 = vmatprep.subr.bf16.mxu0 0
    %658 = vmatpush1.bf16.msra.mxu0 0
    %659 = vmatprep.subr.bf16.mxu0 0
    %660 = vmatpush1.bf16.msra.mxu0 0
    %661 = vmatprep.subr.bf16.mxu0 0
    %662 = vmatpush1.bf16.msra.mxu0 0
    %663 = vmatprep.subr.bf16.mxu0 0
    %664 = vmatpush1.bf16.msra.mxu0 0
    %665 = vmatprep.subr.bf16.mxu0 0
    %666 = vmatpush1.bf16.msra.mxu0 0
    %667 = vmatprep.subr.bf16.mxu0 0
    %668 = vmatpush1.bf16.msra.mxu0 0
    %669 = vmatprep.mubr.bf16.mxu0 0
    %670 = vmatmul.mubr.bf16.gmra.mrb[0].mxu0 %v632
    %v671 = vpop.f32.mrb[0].mxu0
    %v672 = vadd.f32 0.0, %v671
    %v673 = vpop.f32.mrb[0].mxu0
    %v674 = vpop.f32.mrb[0].mxu0
    %v675 = vpop.f32.mrb[0].mxu0
    %676 = vdwg.mxu0
    %679 = vrot.lane.b32.xlu0 %v624, 16
    %v680 = vpop.permute.xlu0 %679
    %681 = vrot.lane.b32.xlu0 %v672, 16
    %v682 = vpop.permute.xlu0 %681
    %v685 = vsel %vm221, %v400, %v680
    %v686 = vsel %vm221, %v448, %v682
    %v687 = vpack.c.bf16 %v686, %v685
    %v688 = vld [vmem:[%s6] sm:$0xf]
    %v689 = vld [vmem:[%s6 + $0x4] sm:$0xf]
    %v690 = vld [vmem:[%s6 + $0x8] sm:$0xf]
    %v691 = vld [vmem:[%s6 + $0xc] sm:$0xf]
    %v692 = vld [vmem:[%s7] sm:$0x1]
    %v694 = vlaneseq
    %v695 = vshrl.u32 %v694, 7
    %v696 = vsub.s32 0, %v695
    %v697 = vrot.slane %v692, %v696
    %v703 = vunpack.c.l.b16 %v688
    %v704 = vunpack.c.l.b16 %v689
    %v705 = vunpack.c.l.b16 %v690
    %v706 = vunpack.c.l.b16 %v691
    %v707 = vpack.c.b16 %v704, %v703
    %v708 = vpack.c.b16 %v706, %v705
    %v712 = vsel %vm80, %v687, 0
    %714 = vmatprep.subr.bf16.mxu0 0
    %715 = vmatpush1.bf16.msra.mxu0 %v707
    %716 = vmatprep.subr.bf16.mxu0 0
    %717 = vmatpush1.bf16.msra.mxu0 %v708
    %718 = vmatprep.subr.bf16.mxu0 0
    %719 = vmatpush1.bf16.msra.mxu0 0
    %720 = vmatprep.subr.bf16.mxu0 0
    %721 = vmatpush1.bf16.msra.mxu0 0
    %722 = vmatprep.subr.bf16.mxu0 0
    %723 = vmatpush1.bf16.msra.mxu0 0
    %724 = vmatprep.subr.bf16.mxu0 0
    %725 = vmatpush1.bf16.msra.mxu0 0
    %726 = vmatprep.subr.bf16.mxu0 0
    %727 = vmatpush1.bf16.msra.mxu0 0
    %728 = vmatprep.subr.bf16.mxu0 0
    %729 = vmatpush1.bf16.msra.mxu0 0
    %730 = vmatprep.subr.bf16.mxu0 0
    %731 = vmatpush1.bf16.msra.mxu0 0
    %732 = vmatprep.subr.bf16.mxu0 0
    %733 = vmatpush1.bf16.msra.mxu0 0
    %734 = vmatprep.subr.bf16.mxu0 0
    %735 = vmatpush1.bf16.msra.mxu0 0
    %736 = vmatprep.subr.bf16.mxu0 0
    %737 = vmatpush1.bf16.msra.mxu0 0
    %738 = vmatprep.subr.bf16.mxu0 0
    %739 = vmatpush1.bf16.msra.mxu0 0
    %740 = vmatprep.subr.bf16.mxu0 0
    %741 = vmatpush1.bf16.msra.mxu0 0
    %742 = vmatprep.subr.bf16.mxu0 0
    %743 = vmatpush1.bf16.msra.mxu0 0
    %744 = vmatprep.subr.bf16.mxu0 0
    %745 = vmatpush1.bf16.msra.mxu0 0
    %746 = vmatprep.mubr.bf16.mxu0 0
    %747 = vmatmul.mubr.bf16.gmra.mrb[0].mxu0 %v712
    %v748 = vpop.f32.mrb[0].mxu0
    %v749 = vadd.f32 %v697, %v748
    %v750 = vpop.f32.mrb[0].mxu0
    %v751 = vpop.f32.mrb[0].mxu0
    %v752 = vadd.f32 %v697, %v751
    %v753 = vpop.f32.mrb[0].mxu0
    %754 = vdwg.mxu0
    %v755 = vadd.f32 %v122, %v749
    %v756 = vadd.f32 %v123, %v752
    %v757 = vld [vmem:[%s8] sm:$0x1]
    %v758 = vld [vmem:[%s9] sm:$0x1]
    %v759 = vsel %vm80, %v755, 0.0
    %760 = vadd.xlane.f32.xlu0 %v759
    %v761 = vpop.xlane.xlu0 %760
    %v762 = vsel %vm80, %v756, 0.0
    %763 = vadd.xlane.f32.xlu0 %v762
    %v764 = vpop.xlane.xlu0 %763
    %v765 = vmul.f32 %v761, %v87
    %v766 = vmul.f32 %v764, %v87
    %v767 = vsub.f32 %v755, %v765
    %v768 = vsub.f32 %v756, %v766
    %v769 = vmul.f32 %v767, %v767
    %v770 = vmul.f32 %v768, %v768
    %v771 = vsel %vm80, %v769, 0.0
    %772 = vadd.xlane.f32.xlu0 %v771
    %v773 = vpop.xlane.xlu0 %772
    %v774 = vsel %vm80, %v770, 0.0
    %775 = vadd.xlane.f32.xlu0 %v774
    %v776 = vpop.xlane.xlu0 %775
    %v777 = vmul.f32 %v773, %v87
    %v778 = vmul.f32 %v776, %v87
    %v779 = vadd.f32 %v777, 1e-12
    %v780 = vadd.f32 %v778, 1e-12
    %v781 = vrsqrt.pop %v779
    %v782 = vrsqrt.pop %v780
    %v783 = vmul.f32 %v767, %v781
    %v784 = vmul.f32 %v768, %v782
    %v786 = vlaneseq
    %v787 = vshrl.u32 %v786, 7
    %v788 = vsub.s32 0, %v787
    %v789 = vrot.slane %v757, %v788
    %v791 = vmul.f32 %v783, %v789
    %v792 = vmul.f32 %v784, %v789
    %v794 = vlaneseq
    %v795 = vshrl.u32 %v794, 7
    %v796 = vsub.s32 0, %v795
    %v797 = vrot.slane %v758, %v796
    %v799 = vadd.f32 %v791, %v797
    %v800 = vadd.f32 %v792, %v797
    %v801 = vpack.c.bf16 %v800, %v799
    %v802 = vld [vmem:[%s10] sm:$0xf]
    %v803 = vld [vmem:[%s10 + $0x4] sm:$0xf]
    %v804 = vld [vmem:[%s10 + $0x8] sm:$0xf]
    %v805 = vld [vmem:[%s10 + $0xc] sm:$0xf]
    %v806 = vld [vmem:[%s11] sm:$0x1]
    %v808 = vlaneseq
    %v809 = vshrl.u32 %v808, 7
    %v810 = vsub.s32 0, %v809
    %v811 = vrot.slane %v806, %v810
    %v817 = vunpack.c.l.b16 %v802
    %v818 = vunpack.c.l.b16 %v803
    %v819 = vunpack.c.l.b16 %v804
    %v820 = vunpack.c.l.b16 %v805
    %v821 = vpack.c.b16 %v818, %v817
    %v822 = vpack.c.b16 %v820, %v819
    %v826 = vsel %vm80, %v801, 0
    %828 = vmatprep.subr.bf16.mxu0 0
    %829 = vmatpush1.bf16.msra.mxu0 %v821
    %830 = vmatprep.subr.bf16.mxu0 0
    %831 = vmatpush1.bf16.msra.mxu0 %v822
    %832 = vmatprep.subr.bf16.mxu0 0
    %833 = vmatpush1.bf16.msra.mxu0 0
    %834 = vmatprep.subr.bf16.mxu0 0
    %835 = vmatpush1.bf16.msra.mxu0 0
    %836 = vmatprep.subr.bf16.mxu0 0
    %837 = vmatpush1.bf16.msra.mxu0 0
    %838 = vmatprep.subr.bf16.mxu0 0
    %839 = vmatpush1.bf16.msra.mxu0 0
    %840 = vmatprep.subr.bf16.mxu0 0
    %841 = vmatpush1.bf16.msra.mxu0 0
    %842 = vmatprep.subr.bf16.mxu0 0
    %843 = vmatpush1.bf16.msra.mxu0 0
    %844 = vmatprep.subr.bf16.mxu0 0
    %845 = vmatpush1.bf16.msra.mxu0 0
    %846 = vmatprep.subr.bf16.mxu0 0
    %847 = vmatpush1.bf16.msra.mxu0 0
    %848 = vmatprep.subr.bf16.mxu0 0
    %849 = vmatpush1.bf16.msra.mxu0 0
    %850 = vmatprep.subr.bf16.mxu0 0
    %851 = vmatpush1.bf16.msra.mxu0 0
    %852 = vmatprep.subr.bf16.mxu0 0
    %853 = vmatpush1.bf16.msra.mxu0 0
    %854 = vmatprep.subr.bf16.mxu0 0
    %855 = vmatpush1.bf16.msra.mxu0 0
    %856 = vmatprep.subr.bf16.mxu0 0
    %857 = vmatpush1.bf16.msra.mxu0 0
    %858 = vmatprep.subr.bf16.mxu0 0
    %859 = vmatpush1.bf16.msra.mxu0 0
    %860 = vmatprep.mubr.bf16.mxu0 0
    %861 = vmatmul.mubr.bf16.gmra.mrb[0].mxu0 %v826
    %v862 = vpop.f32.mrb[0].mxu0
    %v863 = vadd.f32 %v811, %v862
    %v864 = vpop.f32.mrb[0].mxu0
    %v865 = vpop.f32.mrb[0].mxu0
    %v866 = vadd.f32 %v811, %v865
    %v867 = vpop.f32.mrb[0].mxu0
    %868 = vdwg.mxu0
    %v869 = vmul.f32 %v863, 0.5
    %v870 = vmul.f32 %v866, 0.5
    %v871 = vmul.f32 %v863, 0.044715
    %v872 = vmul.f32 %v866, 0.044715
    %v873 = vmul.f32 %v871, %v863
    %v874 = vmul.f32 %v872, %v866
    %v875 = vmul.f32 %v873, %v863
    %v876 = vmul.f32 %v874, %v866
    %v877 = vadd.f32 %v863, %v875
    %v878 = vadd.f32 %v866, %v876
    %v879 = vmul.f32 %v877, 0.7978846
    %v880 = vmul.f32 %v878, 0.7978846
    %v881 = vtanh.pop %v879
    %v882 = vtanh.pop %v880
    %v883 = vadd.f32 %v881, 1.0
    %v884 = vadd.f32 %v882, 1.0
    %v885 = vmul.f32 %v869, %v883
    %v886 = vmul.f32 %v870, %v884
    %v887 = vpack.c.bf16 %v886, %v885
    %v888 = vld [vmem:[%s12] sm:$0xf]
    %v889 = vld [vmem:[%s12 + $0x4] sm:$0xf]
    %v890 = vld [vmem:[%s12 + $0x8] sm:$0xf]
    %v891 = vld [vmem:[%s12 + $0xc] sm:$0xf]
    %v892 = vld [vmem:[%s12 + $0x10] sm:$0xf]
    %v893 = vld [vmem:[%s12 + $0x14] sm:$0xf]
    %v894 = vld [vmem:[%s12 + $0x18] sm:$0xf]
    %v895 = vld [vmem:[%s12 + $0x1c] sm:$0xf]
    %v896 = vld [vmem:[%s13] sm:$0x1]
    %v898 = vlaneseq
    %v899 = vshrl.u32 %v898, 7
    %v900 = vsub.s32 0, %v899
    %v901 = vrot.slane %v896, %v900
    %v911 = vunpack.c.l.b16 %v888
    %v912 = vunpack.c.l.b16 %v889
    %v913 = vunpack.c.l.b16 %v890
    %v914 = vunpack.c.l.b16 %v891
    %v915 = vunpack.c.l.b16 %v892
    %v916 = vunpack.c.l.b16 %v893
    %v917 = vunpack.c.l.b16 %v894
    %v918 = vunpack.c.l.b16 %v895
    %v919 = vpack.c.b16 %v912, %v911
    %v920 = vpack.c.b16 %v914, %v913
    %v921 = vpack.c.b16 %v916, %v915
    %v922 = vpack.c.b16 %v918, %v917
    %vm927 = vcmask 523264
    %v929 = vsel %vm927, %v887, 0
    %931 = vmatprep.subr.bf16.mxu0 0
    %932 = vmatpush1.bf16.msra.mxu0 %v919
    %933 = vmatprep.subr.bf16.mxu0 0
    %934 = vmatpush1.bf16.msra.mxu0 %v920
    %935 = vmatprep.subr.bf16.mxu0 0
    %936 = vmatpush1.bf16.msra.mxu0 %v921
    %937 = vmatprep.subr.bf16.mxu0 0
    %938 = vmatpush1.bf16.msra.mxu0 %v922
    %939 = vmatprep.subr.bf16.mxu0 0
    %940 = vmatpush1.bf16.msra.mxu0 0
    %941 = vmatprep.subr.bf16.mxu0 0
    %942 = vmatpush1.bf16.msra.mxu0 0
    %943 = vmatprep.subr.bf16.mxu0 0
    %944 = vmatpush1.bf16.msra.mxu0 0
    %945 = vmatprep.subr.bf16.mxu0 0
    %946 = vmatpush1.bf16.msra.mxu0 0
    %947 = vmatprep.subr.bf16.mxu0 0
    %948 = vmatpush1.bf16.msra.mxu0 0
    %949 = vmatprep.subr.bf16.mxu0 0
    %950 = vmatpush1.bf16.msra.mxu0 0
    %951 = vmatprep.subr.bf16.mxu0 0
    %952 = vmatpush1.bf16.msra.mxu0 0
    %953 = vmatprep.subr.bf16.mxu0 0
    %954 = vmatpush1.bf16.msra.mxu0 0
    %955 = vmatprep.subr.bf16.mxu0 0
    %956 = vmatpush1.bf16.msra.mxu0 0
    %957 = vmatprep.subr.bf16.mxu0 0
    %958 = vmatpush1.bf16.msra.mxu0 0
    %959 = vmatprep.subr.bf16.mxu0 0
    %960 = vmatpush1.bf16.msra.mxu0 0
    %961 = vmatprep.subr.bf16.mxu0 0
    %962 = vmatpush1.bf16.msra.mxu0 0
    %963 = vmatprep.mubr.bf16.mxu0 0
    %964 = vmatmul.mubr.bf16.gmra.mrb[0].mxu0 %v929
    %v965 = vpop.f32.mrb[0].mxu0
    %v966 = vadd.f32 %v901, %v965
    %v967 = vpop.f32.mrb[0].mxu0
    %v968 = vpop.f32.mrb[0].mxu0
    %v969 = vadd.f32 %v901, %v968
    %v970 = vpop.f32.mrb[0].mxu0
    %971 = vdwg.mxu0
    %v972 = vadd.f32 %v799, %v966
    %v973 = vadd.f32 %v800, %v969
    %v974 = vld [vmem:[%s14] sm:$0x1]
    %v975 = vld [vmem:[%s15] sm:$0x1]
    %v976 = vsel %vm80, %v972, 0.0
    %977 = vadd.xlane.f32.xlu0 %v976
    %v978 = vpop.xlane.xlu0 %977
    %v979 = vsel %vm80, %v973, 0.0
    %980 = vadd.xlane.f32.xlu0 %v979
    %v981 = vpop.xlane.xlu0 %980
    %v982 = vmul.f32 %v978, %v87
    %v983 = vmul.f32 %v981, %v87
    %v984 = vsub.f32 %v972, %v982
    %v985 = vsub.f32 %v973, %v983
    %v986 = vmul.f32 %v984, %v984
    %v987 = vmul.f32 %v985, %v985
    %v988 = vsel %vm80, %v986, 0.0
    %989 = vadd.xlane.f32.xlu0 %v988
    %v990 = vpop.xlane.xlu0 %989
    %v991 = vsel %vm80, %v987, 0.0
    %992 = vadd.xlane.f32.xlu0 %v991
    %v993 = vpop.xlane.xlu0 %992
    %v994 = vmul.f32 %v990, %v87
    %v995 = vmul.f32 %v993, %v87
    %v996 = vadd.f32 %v994, 1e-12
    %v997 = vadd.f32 %v995, 1e-12
    %v998 = vrsqrt.pop %v996
    %v999 = vrsqrt.pop %v997
    %v1000 = vmul.f32 %v984, %v998
    %v1001 = vmul.f32 %v985, %v999
    %v1003 = vlaneseq
    %v1004 = vshrl.u32 %v1003, 7
    %v1005 = vsub.s32 0, %v1004
    %v1006 = vrot.slane %v974, %v1005
    %v1008 = vmul.f32 %v1000, %v1006
    %v1009 = vmul.f32 %v1001, %v1006
    %v1011 = vlaneseq
    %v1012 = vshrl.u32 %v1011, 7
    %v1013 = vsub.s32 0, %v1012
    %v1014 = vrot.slane %v975, %v1013
    %v1016 = vadd.f32 %v1008, %v1014
    %v1017 = vadd.f32 %v1009, %v1014
    %v1018 = vpack.c.bf16 %v1017, %v1016
    %s1019 = scalar_lea.vmem %s4, 16
    %v1020 = vld [vmem:[%s1019] sm:$0xf]
    %v1021 = vld [vmem:[%s1019 + $0x4] sm:$0xf]
    %v1022 = vld [vmem:[%s1019 + $0x8] sm:$0xf]
    %v1023 = vld [vmem:[%s1019 + $0xc] sm:$0xf]
    %s1024 = scalar_lea.vmem %s5, 1
    %v1025 = vld [vmem:[%s1024] sm:$0x1]
    %v1027 = vlaneseq
    %v1028 = vshrl.u32 %v1027, 7
    %v1029 = vsub.s32 0, %v1028
    %v1030 = vrot.slane %v1025, %v1029
    %v1036 = vunpack.c.l.b16 %v1020
    %v1037 = vunpack.c.l.b16 %v1021
    %v1038 = vunpack.c.l.b16 %v1022
    %v1039 = vunpack.c.l.b16 %v1023
    %v1040 = vpack.c.b16 %v1037, %v1036
    %v1041 = vpack.c.b16 %v1039, %v1038
    %v1045 = vsel %vm80, %v1018, 0
    %1047 = vmatprep.subr.bf16.mxu0 0
    %1048 = vmatpush1.bf16.msra.mxu0 %v1040
    %1049 = vmatprep.subr.bf16.mxu0 0
    %1050 = vmatpush1.bf16.msra.mxu0 %v1041
    %1051 = vmatprep.subr.bf16.mxu0 0
    %1052 = vmatpush1.bf16.msra.mxu0 0
    %1053 = vmatprep.subr.bf16.mxu0 0
    %1054 = vmatpush1.bf16.msra.mxu0 0
    %1055 = vmatprep.subr.bf16.mxu0 0
    %1056 = vmatpush1.bf16.msra.mxu0 0
    %1057 = vmatprep.subr.bf16.mxu0 0
    %1058 = vmatpush1.bf16.msra.mxu0 0
    %1059 = vmatprep.subr.bf16.mxu0 0
    %1060 = vmatpush1.bf16.msra.mxu0 0
    %1061 = vmatprep.subr.bf16.mxu0 0
    %1062 = vmatpush1.bf16.msra.mxu0 0
    %1063 = vmatprep.subr.bf16.mxu0 0
    %1064 = vmatpush1.bf16.msra.mxu0 0
    %1065 = vmatprep.subr.bf16.mxu0 0
    %1066 = vmatpush1.bf16.msra.mxu0 0
    %1067 = vmatprep.subr.bf16.mxu0 0
    %1068 = vmatpush1.bf16.msra.mxu0 0
    %1069 = vmatprep.subr.bf16.mxu0 0
    %1070 = vmatpush1.bf16.msra.mxu0 0
    %1071 = vmatprep.subr.bf16.mxu0 0
    %1072 = vmatpush1.bf16.msra.mxu0 0
    %1073 = vmatprep.subr.bf16.mxu0 0
    %1074 = vmatpush1.bf16.msra.mxu0 0
    %1075 = vmatprep.subr.bf16.mxu0 0
    %1076 = vmatpush1.bf16.msra.mxu0 0
    %1077 = vmatprep.subr.bf16.mxu0 0
    %1078 = vmatpush1.bf16.msra.mxu0 0
    %1079 = vmatprep.mubr.bf16.mxu0 0
    %1080 = vmatmul.mubr.bf16.gmra.mrb[0].mxu0 %v1045
    %v1081 = vpop.f32.mrb[0].mxu0
    %v1082 = vadd.f32 %v1030, %v1081
    %v1083 = vpop.f32.mrb[0].mxu0
    %v1084 = vpop.f32.mrb[0].mxu0
    %v1085 = vadd.f32 %v1030, %v1084
    %v1086 = vpop.f32.mrb[0].mxu0
    %1087 = vdwg.mxu0
    %v1088 = vpack.c.bf16 %v1082, %v1082
    %v1089 = vpack.c.bf16 %v1085, %v1085
    %1091 = vrot.lane.b32.xlu0 %v1088, 96
    %v1092 = vpop.permute.xlu0 %1091
    %v1094 = vsel %vm221, %v1088, 0
    %v1097 = vsel %vm221, %v1092, 0
    %1099 = vmatprep.subr.bf16.mxu0 0
    %1100 = vmatpush1.bf16.xpose.msra.mxu0 %v1097
    %1101 = vmatprep.subr.bf16.mxu0 0
    %1102 = vmatpush1.bf16.xpose.msra.mxu0 0
    %1103 = vmatprep.subr.bf16.mxu0 0
    %1104 = vmatpush1.bf16.xpose.msra.mxu0 0
    %1105 = vmatprep.subr.bf16.mxu0 0
    %1106 = vmatpush1.bf16.xpose.msra.mxu0 0
    %1107 = vmatprep.subr.bf16.mxu0 0
    %1108 = vmatpush1.bf16.xpose.msra.mxu0 0
    %1109 = vmatprep.subr.bf16.mxu0 0
    %1110 = vmatpush1.bf16.xpose.msra.mxu0 0
    %1111 = vmatprep.subr.bf16.mxu0 0
    %1112 = vmatpush1.bf16.xpose.msra.mxu0 0
    %1113 = vmatprep.subr.bf16.mxu0 0
    %1114 = vmatpush1.bf16.xpose.msra.mxu0 0
    %1115 = vmatprep.subr.bf16.mxu0 0
    %1116 = vmatpush1.bf16.xpose.msra.mxu0 0
    %1117 = vmatprep.subr.bf16.mxu0 0
    %1118 = vmatpush1.bf16.xpose.msra.mxu0 0
    %1119 = vmatprep.subr.bf16.mxu0 0
    %1120 = vmatpush1.bf16.xpose.msra.mxu0 0
    %1121 = vmatprep.subr.bf16.mxu0 0
    %1122 = vmatpush1.bf16.xpose.msra.mxu0 0
    %1123 = vmatprep.subr.bf16.mxu0 0
    %1124 = vmatpush1.bf16.xpose.msra.mxu0 0
    %1125 = vmatprep.subr.bf16.mxu0 0
    %1126 = vmatpush1.bf16.xpose.msra.mxu0 0
    %1127 = vmatprep.subr.bf16.mxu0 0
    %1128 = vmatpush1.bf16.xpose.msra.mxu0 0
    %1129 = vmatprep.subr.bf16.mxu0 0
    %1130 = vmatpush1.bf16.xpose.msra.mxu0 0
    %1131 = vmatprep.mubr.bf16.mxu0 0
    %1132 = vmatmul.mubr.bf16.gmra.mrb[0].mxu0 %v1094
    %v1133 = vpop.f32.mrb[0].mxu0
    %v1134 = vadd.f32 0.0, %v1133
    %v1135 = vpop.f32.mrb[0].mxu0
    %v1136 = vpop.f32.mrb[0].mxu0
    %v1137 = vpop.f32.mrb[0].mxu0
    %1138 = vdwg.mxu0
    %1140 = vrot.lane.b32.xlu0 %v1089, 96
    %v1141 = vpop.permute.xlu0 %1140
    %v1143 = vsel %vm221, %v1089, 0
    %v1146 = vsel %vm221, %v1141, 0
    %1148 = vmatprep.subr.bf16.mxu0 0
    %1149 = vmatpush1.bf16.xpose.msra.mxu0 %v1146
    %1150 = vmatprep.subr.bf16.mxu0 0
    %1151 = vmatpush1.bf16.xpose.msra.mxu0 0
    %1152 = vmatprep.subr.bf16.mxu0 0
    %1153 = vmatpush1.bf16.xpose.msra.mxu0 0
    %1154 = vmatprep.subr.bf16.mxu0 0
    %1155 = vmatpush1.bf16.xpose.msra.mxu0 0
    %1156 = vmatprep.subr.bf16.mxu0 0
    %1157 = vmatpush1.bf16.xpose.msra.mxu0 0
    %1158 = vmatprep.subr.bf16.mxu0 0
    %1159 = vmatpush1.bf16.xpose.msra.mxu0 0
    %1160 = vmatprep.subr.bf16.mxu0 0
    %1161 = vmatpush1.bf16.xpose.msra.mxu0 0
    %1162 = vmatprep.subr.bf16.mxu0 0
    %1163 = vmatpush1.bf16.xpose.msra.mxu0 0
    %1164 = vmatprep.subr.bf16.mxu0 0
    %1165 = vmatpush1.bf16.xpose.msra.mxu0 0
    %1166 = vmatprep.subr.bf16.mxu0 0
    %1167 = vmatpush1.bf16.xpose.msra.mxu0 0
    %1168 = vmatprep.subr.bf16.mxu0 0
    %1169 = vmatpush1.bf16.xpose.msra.mxu0 0
    %1170 = vmatprep.subr.bf16.mxu0 0
    %1171 = vmatpush1.bf16.xpose.msra.mxu0 0
    %1172 = vmatprep.subr.bf16.mxu0 0
    %1173 = vmatpush1.bf16.xpose.msra.mxu0 0
    %1174 = vmatprep.subr.bf16.mxu0 0
    %1175 = vmatpush1.bf16.xpose.msra.mxu0 0
    %1176 = vmatprep.subr.bf16.mxu0 0
    %1177 = vmatpush1.bf16.xpose.msra.mxu0 0
    %1178 = vmatprep.subr.bf16.mxu0 0
    %1179 = vmatpush1.bf16.xpose.msra.mxu0 0
    %1180 = vmatprep.mubr.bf16.mxu0 0
    %1181 = vmatmul.mubr.bf16.gmra.mrb[0].mxu0 %v1143
    %v1182 = vpop.f32.mrb[0].mxu0
    %v1183 = vadd.f32 0.0, %v1182
    %v1184 = vpop.f32.mrb[0].mxu0
    %v1185 = vpop.f32.mrb[0].mxu0
    %v1186 = vpop.f32.mrb[0].mxu0
    %1187 = vdwg.mxu0
    %v1188 = vmul.f32 %v1134, 0.25
    %v1189 = vmul.f32 %v1183, 0.25
    %v1190 = vadd.f32 %v1188, %v322
    %v1191 = vadd.f32 %v1189, %v326
    %v1192 = vsel %vm331, %v1190, -inf
    %1193 = vmax.xlane.f32.xlu0 %v1192
    %v1194 = vpop.xlane.xlu0 %1193
    %v1195 = vsel %vm331, %v1191, -inf
    %1196 = vmax.xlane.f32.xlu0 %v1195
    %v1197 = vpop.xlane.xlu0 %1196
    %v1198 = vsub.f32 %v1190, %v1194
    %v1199 = vsub.f32 %v1191, %v1197
    %v1200 = vmul.f32 %v1198, 1.442695
    %v1201 = vpow.pop %v1200
    %v1202 = vmul.f32 %v1199, 1.442695
    %v1203 = vpow.pop %v1202
    %v1204 = vsel %vm331, %v1201, 0.0
    %1205 = vadd.xlane.f32.xlu0 %v1204
    %v1206 = vpop.xlane.xlu0 %1205
    %v1207 = vsel %vm331, %v1203, 0.0
    %1208 = vadd.xlane.f32.xlu0 %v1207
    %v1209 = vpop.xlane.xlu0 %1208
    %v1210 = vrcp.pop %v1206
    %v1211 = vrcp.pop %v1209
    %v1212 = vmul.f32 %v1201, %v1210
    %v1213 = vmul.f32 %v1203, %v1211
    %v1214 = vpack.c.bf16 %v1212, %v1212
    %v1215 = vpack.c.bf16 %v1213, %v1213
    %1216 = vrot.lane.b32.xlu0 %v1088, 64
    %v1217 = vpop.permute.xlu0 %1216
    %v1219 = vsel %vm331, %v1214, 0
    %v1222 = vsel %vm361, %v1217, 0
    %1224 = vmatprep.subr.bf16.mxu0 0
    %1225 = vmatpush1.bf16.msra.mxu0 %v1222
    %1226 = vmatprep.subr.bf16.mxu0 0
    %1227 = vmatpush1.bf16.msra.mxu0 0
    %1228 = vmatprep.subr.bf16.mxu0 0
    %1229 = vmatpush1.bf16.msra.mxu0 0
    %1230 = vmatprep.subr.bf16.mxu0 0
    %1231 = vmatpush1.bf16.msra.mxu0 0
    %1232 = vmatprep.subr.bf16.mxu0 0
    %1233 = vmatpush1.bf16.msra.mxu0 0
    %1234 = vmatprep.subr.bf16.mxu0 0
    %1235 = vmatpush1.bf16.msra.mxu0 0
    %1236 = vmatprep.subr.bf16.mxu0 0
    %1237 = vmatpush1.bf16.msra.mxu0 0
    %1238 = vmatprep.subr.bf16.mxu0 0
    %1239 = vmatpush1.bf16.msra.mxu0 0
    %1240 = vmatprep.subr.bf16.mxu0 0
    %1241 = vmatpush1.bf16.msra.mxu0 0
    %1242 = vmatprep.subr.bf16.mxu0 0
    %1243 = vmatpush1.bf16.msra.mxu0 0
    %1244 = vmatprep.subr.bf16.mxu0 0
    %1245 = vmatpush1.bf16.msra.mxu0 0
    %1246 = vmatprep.subr.bf16.mxu0 0
    %1247 = vmatpush1.bf16.msra.mxu0 0
    %1248 = vmatprep.subr.bf16.mxu0 0
    %1249 = vmatpush1.bf16.msra.mxu0 0
    %1250 = vmatprep.subr.bf16.mxu0 0
    %1251 = vmatpush1.bf16.msra.mxu0 0
    %1252 = vmatprep.subr.bf16.mxu0 0
    %1253 = vmatpush1.bf16.msra.mxu0 0
    %1254 = vmatprep.subr.bf16.mxu0 0
    %1255 = vmatpush1.bf16.msra.mxu0 0
    %1256 = vmatprep.mubr.bf16.mxu0 0
    %1257 = vmatmul.mubr.bf16.gmra.mrb[0].mxu0 %v1219
    %v1258 = vpop.f32.mrb[0].mxu0
    %v1259 = vadd.f32 0.0, %v1258
    %v1260 = vpop.f32.mrb[0].mxu0
    %v1261 = vpop.f32.mrb[0].mxu0
    %v1262 = vpop.f32.mrb[0].mxu0
    %1263 = vdwg.mxu0
    %1264 = vrot.lane.b32.xlu0 %v1089, 64
    %v1265 = vpop.permute.xlu0 %1264
    %v1267 = vsel %vm331, %v1215, 0
    %v1270 = vsel %vm361, %v1265, 0
    %1272 = vmatprep.subr.bf16.mxu0 0
    %1273 = vmatpush1.bf16.msra.mxu0 %v1270
    %1274 = vmatprep.subr.bf16.mxu0 0
    %1275 = vmatpush1.bf16.msra.mxu0 0
    %1276 = vmatprep.subr.bf16.mxu0 0
    %1277 = vmatpush1.bf16.msra.mxu0 0
    %1278 = vmatprep.subr.bf16.mxu0 0
    %1279 = vmatpush1.bf16.msra.mxu0 0
    %1280 = vmatprep.subr.bf16.mxu0 0
    %1281 = vmatpush1.bf16.msra.mxu0 0
    %1282 = vmatprep.subr.bf16.mxu0 0
    %1283 = vmatpush1.bf16.msra.mxu0 0
    %1284 = vmatprep.subr.bf16.mxu0 0
    %1285 = vmatpush1.bf16.msra.mxu0 0
    %1286 = vmatprep.subr.bf16.mxu0 0
    %1287 = vmatpush1.bf16.msra.mxu0 0
    %1288 = vmatprep.subr.bf16.mxu0 0
    %1289 = vmatpush1.bf16.msra.mxu0 0
    %1290 = vmatprep.subr.bf16.mxu0 0
    %1291 = vmatpush1.bf16.msra.mxu0 0
    %1292 = vmatprep.subr.bf16.mxu0 0
    %1293 = vmatpush1.bf16.msra.mxu0 0
    %1294 = vmatprep.subr.bf16.mxu0 0
    %1295 = vmatpush1.bf16.msra.mxu0 0
    %1296 = vmatprep.subr.bf16.mxu0 0
    %1297 = vmatpush1.bf16.msra.mxu0 0
    %1298 = vmatprep.subr.bf16.mxu0 0
    %1299 = vmatpush1.bf16.msra.mxu0 0
    %1300 = vmatprep.subr.bf16.mxu0 0
    %1301 = vmatpush1.bf16.msra.mxu0 0
    %1302 = vmatprep.subr.bf16.mxu0 0
    %1303 = vmatpush1.bf16.msra.mxu0 0
    %1304 = vmatprep.mubr.bf16.mxu0 0
    %1305 = vmatmul.mubr.bf16.gmra.mrb[0].mxu0 %v1267
    %v1306 = vpop.f32.mrb[0].mxu0
    %v1307 = vadd.f32 0.0, %v1306
    %v1308 = vpop.f32.mrb[0].mxu0
    %v1309 = vpop.f32.mrb[0].mxu0
    %v1310 = vpop.f32.mrb[0].mxu0
    %1311 = vdwg.mxu0
    %1312 = vrot.lane.b32.xlu0 %v1088, 112
    %v1313 = vpop.permute.xlu0 %1312
    %1314 = vrot.lane.b32.xlu0 %v1088, 80
    %v1315 = vpop.permute.xlu0 %1314
    %v1317 = vsel %vm221, %v1313, 0
    %v1320 = vsel %vm221, %v1315, 0
    %1322 = vmatprep.subr.bf16.mxu0 0
    %1323 = vmatpush1.bf16.xpose.msra.mxu0 %v1320
    %1324 = vmatprep.subr.bf16.mxu0 0
    %1325 = vmatpush1.bf16.xpose.msra.mxu0 0
    %1326 = vmatprep.subr.bf16.mxu0 0
    %1327 = vmatpush1.bf16.xpose.msra.mxu0 0
    %1328 = vmatprep.subr.bf16.mxu0 0
    %1329 = vmatpush1.bf16.xpose.msra.mxu0 0
    %1330 = vmatprep.subr.bf16.mxu0 0
    %1331 = vmatpush1.bf16.xpose.msra.mxu0 0
    %1332 = vmatprep.subr.bf16.mxu0 0
    %1333 = vmatpush1.bf16.xpose.msra.mxu0 0
    %1334 = vmatprep.subr.bf16.mxu0 0
    %1335 = vmatpush1.bf16.xpose.msra.mxu0 0
    %1336 = vmatprep.subr.bf16.mxu0 0
    %1337 = vmatpush1.bf16.xpose.msra.mxu0 0
    %1338 = vmatprep.subr.bf16.mxu0 0
    %1339 = vmatpush1.bf16.xpose.msra.mxu0 0
    %1340 = vmatprep.subr.bf16.mxu0 0
    %1341 = vmatpush1.bf16.xpose.msra.mxu0 0
    %1342 = vmatprep.subr.bf16.mxu0 0
    %1343 = vmatpush1.bf16.xpose.msra.mxu0 0
    %1344 = vmatprep.subr.bf16.mxu0 0
    %1345 = vmatpush1.bf16.xpose.msra.mxu0 0
    %1346 = vmatprep.subr.bf16.mxu0 0
    %1347 = vmatpush1.bf16.xpose.msra.mxu0 0
    %1348 = vmatprep.subr.bf16.mxu0 0
    %1349 = vmatpush1.bf16.xpose.msra.mxu0 0
    %1350 = vmatprep.subr.bf16.mxu0 0
    %1351 = vmatpush1.bf16.xpose.msra.mxu0 0
    %1352 = vmatprep.subr.bf16.mxu0 0
    %1353 = vmatpush1.bf16.xpose.msra.mxu0 0
    %1354 = vmatprep.mubr.bf16.mxu0 0
    %1355 = vmatmul.mubr.bf16.gmra.mrb[0].mxu0 %v1317
    %v1356 = vpop.f32.mrb[0].mxu0
    %v1357 = vadd.f32 0.0, %v1356
    %v1358 = vpop.f32.mrb[0].mxu0
    %v1359 = vpop.f32.mrb[0].mxu0
    %v1360 = vpop.f32.mrb[0].mxu0
    %1361 = vdwg.mxu0
    %1362 = vrot.lane.b32.xlu0 %v1089, 112
    %v1363 = vpop.permute.xlu0 %1362
    %1364 = vrot.lane.b32.xlu0 %v1089, 80
    %v1365 = vpop.permute.xlu0 %1364
    %v1367 = vsel %vm221, %v1363, 0
    %v1370 = vsel %vm221, %v1365, 0
    %1372 = vmatprep.subr.bf16.mxu0 0
    %1373 = vmatpush1.bf16.xpose.msra.mxu0 %v1370
    %1374 = vmatprep.subr.bf16.mxu0 0
    %1375 = vmatpush1.bf16.xpose.msra.mxu0 0
    %1376 = vmatprep.subr.bf16.mxu0 0
    %1377 = vmatpush1.bf16.xpose.msra.mxu0 0
    %1378 = vmatprep.subr.bf16.mxu0 0
    %1379 = vmatpush1.bf16.xpose.msra.mxu0 0
    %1380 = vmatprep.subr.bf16.mxu0 0
    %1381 = vmatpush1.bf16.xpose.msra.mxu0 0
    %1382 = vmatprep.subr.bf16.mxu0 0
    %1383 = vmatpush1.bf16.xpose.msra.mxu0 0
    %1384 = vmatprep.subr.bf16.mxu0 0
    %1385 = vmatpush1.bf16.xpose.msra.mxu0 0
    %1386 = vmatprep.subr.bf16.mxu0 0
    %1387 = vmatpush1.bf16.xpose.msra.mxu0 0
    %1388 = vmatprep.subr.bf16.mxu0 0
    %1389 = vmatpush1.bf16.xpose.msra.mxu0 0
    %1390 = vmatprep.subr.bf16.mxu0 0
    %1391 = vmatpush1.bf16.xpose.msra.mxu0 0
    %1392 = vmatprep.subr.bf16.mxu0 0
    %1393 = vmatpush1.bf16.xpose.msra.mxu0 0
    %1394 = vmatprep.subr.bf16.mxu0 0
    %1395 = vmatpush1.bf16.xpose.msra.mxu0 0
    %1396 = vmatprep.subr.bf16.mxu0 0
    %1397 = vmatpush1.bf16.xpose.msra.mxu0 0
    %1398 = vmatprep.subr.bf16.mxu0 0
    %1399 = vmatpush1.bf16.xpose.msra.mxu0 0
    %1400 = vmatprep.subr.bf16.mxu0 0
    %1401 = vmatpush1.bf16.xpose.msra.mxu0 0
    %1402 = vmatprep.subr.bf16.mxu0 0
    %1403 = vmatpush1.bf16.xpose.msra.mxu0 0
    %1404 = vmatprep.mubr.bf16.mxu0 0
    %1405 = vmatmul.mubr.bf16.gmra.mrb[0].mxu0 %v1367
    %v1406 = vpop.f32.mrb[0].mxu0
    %v1407 = vadd.f32 0.0, %v1406
    %v1408 = vpop.f32.mrb[0].mxu0
    %v1409 = vpop.f32.mrb[0].mxu0
    %v1410 = vpop.f32.mrb[0].mxu0
    %1411 = vdwg.mxu0
    %v1412 = vmul.f32 %v1357, 0.25
    %v1413 = vmul.f32 %v1407, 0.25
    %v1414 = vadd.f32 %v1412, %v322
    %v1415 = vadd.f32 %v1413, %v326
    %v1416 = vsel %vm331, %v1414, -inf
    %1417 = vmax.xlane.f32.xlu0 %v1416
    %v1418 = vpop.xlane.xlu0 %1417
    %v1419 = vsel %vm331, %v1415, -inf
    %1420 = vmax.xlane.f32.xlu0 %v1419
    %v1421 = vpop.xlane.xlu0 %1420
    %v1422 = vsub.f32 %v1414, %v1418
    %v1423 = vsub.f32 %v1415, %v1421
    %v1424 = vmul.f32 %v1422, 1.442695
    %v1425 = vpow.pop %v1424
    %v1426 = vmul.f32 %v1423, 1.442695
    %v1427 = vpow.pop %v1426
    %v1428 = vsel %vm331, %v1425, 0.0
    %1429 = vadd.xlane.f32.xlu0 %v1428
    %v1430 = vpop.xlane.xlu0 %1429
    %v1431 = vsel %vm331, %v1427, 0.0
    %1432 = vadd.xlane.f32.xlu0 %v1431
    %v1433 = vpop.xlane.xlu0 %1432
    %v1434 = vrcp.pop %v1430
    %v1435 = vrcp.pop %v1433
    %v1436 = vmul.f32 %v1425, %v1434
    %v1437 = vmul.f32 %v1427, %v1435
    %v1438 = vpack.c.bf16 %v1436, %v1436
    %v1439 = vpack.c.bf16 %v1437, %v1437
    %1440 = vrot.lane.b32.xlu0 %v1088, 48
    %v1441 = vpop.permute.xlu0 %1440
    %v1443 = vsel %vm331, %v1438, 0
    %v1446 = vsel %vm361, %v1441, 0
    %1448 = vmatprep.subr.bf16.mxu0 0
    %1449 = vmatpush1.bf16.msra.mxu0 %v1446
    %1450 = vmatprep.subr.bf16.mxu0 0
    %1451 = vmatpush1.bf16.msra.mxu0 0
    %1452 = vmatprep.subr.bf16.mxu0 0
    %1453 = vmatpush1.bf16.msra.mxu0 0
    %1454 = vmatprep.subr.bf16.mxu0 0
    %1455 = vmatpush1.bf16.msra.mxu0 0
    %1456 = vmatprep.subr.bf16.mxu0 0
    %1457 = vmatpush1.bf16.msra.mxu0 0
    %1458 = vmatprep.subr.bf16.mxu0 0
    %1459 = vmatpush1.bf16.msra.mxu0 0
    %1460 = vmatprep.subr.bf16.mxu0 0
    %1461 = vmatpush1.bf16.msra.mxu0 0
    %1462 = vmatprep.subr.bf16.mxu0 0
    %1463 = vmatpush1.bf16.msra.mxu0 0
    %1464 = vmatprep.subr.bf16.mxu0 0
    %1465 = vmatpush1.bf16.msra.mxu0 0
    %1466 = vmatprep.subr.bf16.mxu0 0
    %1467 = vmatpush1.bf16.msra.mxu0 0
    %1468 = vmatprep.subr.bf16.mxu0 0
    %1469 = vmatpush1.bf16.msra.mxu0 0
    %1470 = vmatprep.subr.bf16.mxu0 0
    %1471 = vmatpush1.bf16.msra.mxu0 0
    %1472 = vmatprep.subr.bf16.mxu0 0
    %1473 = vmatpush1.bf16.msra.mxu0 0
    %1474 = vmatprep.subr.bf16.mxu0 0
    %1475 = vmatpush1.bf16.msra.mxu0 0
    %1476 = vmatprep.subr.bf16.mxu0 0
    %1477 = vmatpush1.bf16.msra.mxu0 0
    %1478 = vmatprep.subr.bf16.mxu0 0
    %1479 = vmatpush1.bf16.msra.mxu0 0
    %1480 = vmatprep.mubr.bf16.mxu0 0
    %1481 = vmatmul.mubr.bf16.gmra.mrb[0].mxu0 %v1443
    %v1482 = vpop.f32.mrb[0].mxu0
    %v1483 = vadd.f32 0.0, %v1482
    %v1484 = vpop.f32.mrb[0].mxu0
    %v1485 = vpop.f32.mrb[0].mxu0
    %v1486 = vpop.f32.mrb[0].mxu0
    %1487 = vdwg.mxu0
    %1488 = vrot.lane.b32.xlu0 %v1089, 48
    %v1489 = vpop.permute.xlu0 %1488
    %v1491 = vsel %vm331, %v1439, 0
    %v1494 = vsel %vm361, %v1489, 0
    %1496 = vmatprep.subr.bf16.mxu0 0
    %1497 = vmatpush1.bf16.msra.mxu0 %v1494
    %1498 = vmatprep.subr.bf16.mxu0 0
    %1499 = vmatpush1.bf16.msra.mxu0 0
    %1500 = vmatprep.subr.bf16.mxu0 0
    %1501 = vmatpush1.bf16.msra.mxu0 0
    %1502 = vmatprep.subr.bf16.mxu0 0
    %1503 = vmatpush1.bf16.msra.mxu0 0
    %1504 = vmatprep.subr.bf16.mxu0 0
    %1505 = vmatpush1.bf16.msra.mxu0 0
    %1506 = vmatprep.subr.bf16.mxu0 0
    %1507 = vmatpush1.bf16.msra.mxu0 0
    %1508 = vmatprep.subr.bf16.mxu0 0
    %1509 = vmatpush1.bf16.msra.mxu0 0
    %1510 = vmatprep.subr.bf16.mxu0 0
    %1511 = vmatpush1.bf16.msra.mxu0 0
    %1512 = vmatprep.subr.bf16.mxu0 0
    %1513 = vmatpush1.bf16.msra.mxu0 0
    %1514 = vmatprep.subr.bf16.mxu0 0
    %1515 = vmatpush1.bf16.msra.mxu0 0
    %1516 = vmatprep.subr.bf16.mxu0 0
    %1517 = vmatpush1.bf16.msra.mxu0 0
    %1518 = vmatprep.subr.bf16.mxu0 0
    %1519 = vmatpush1.bf16.msra.mxu0 0
    %1520 = vmatprep.subr.bf16.mxu0 0
    %1521 = vmatpush1.bf16.msra.mxu0 0
    %1522 = vmatprep.subr.bf16.mxu0 0
    %1523 = vmatpush1.bf16.msra.mxu0 0
    %1524 = vmatprep.subr.bf16.mxu0 0
    %1525 = vmatpush1.bf16.msra.mxu0 0
    %1526 = vmatprep.subr.bf16.mxu0 0
    %1527 = vmatpush1.bf16.msra.mxu0 0
    %1528 = vmatprep.mubr.bf16.mxu0 0
    %1529 = vmatmul.mubr.bf16.gmra.mrb[0].mxu0 %v1491
    %v1530 = vpop.f32.mrb[0].mxu0
    %v1531 = vadd.f32 0.0, %v1530
    %v1532 = vpop.f32.mrb[0].mxu0
    %v1533 = vpop.f32.mrb[0].mxu0
    %v1534 = vpop.f32.mrb[0].mxu0
    %1535 = vdwg.mxu0
    %1538 = vrot.lane.b32.xlu0 %v1483, 16
    %v1539 = vpop.permute.xlu0 %1538
    %1540 = vrot.lane.b32.xlu0 %v1531, 16
    %v1541 = vpop.permute.xlu0 %1540
    %v1544 = vsel %vm221, %v1259, %v1539
    %v1545 = vsel %vm221, %v1307, %v1541
    %v1546 = vpack.c.bf16 %v1545, %v1544
    %s1547 = scalar_lea.vmem %s6, 16
    %v1548 = vld [vmem:[%s1547] sm:$0xf]
    %v1549 = vld [vmem:[%s1547 + $0x4] sm:$0xf]
    %v1550 = vld [vmem:[%s1547 + $0x8] sm:$0xf]
    %v1551 = vld [vmem:[%s1547 + $0xc] sm:$0xf]
    %s1552 = scalar_lea.vmem %s7, 1
    %v1553 = vld [vmem:[%s1552] sm:$0x1]
    %v1555 = vlaneseq
    %v1556 = vshrl.u32 %v1555, 7
    %v1557 = vsub.s32 0, %v1556
    %v1558 = vrot.slane %v1553, %v1557
    %v1564 = vunpack.c.l.b16 %v1548
    %v1565 = vunpack.c.l.b16 %v1549
    %v1566 = vunpack.c.l.b16 %v1550
    %v1567 = vunpack.c.l.b16 %v1551
    %v1568 = vpack.c.b16 %v1565, %v1564
    %v1569 = vpack.c.b16 %v1567, %v1566
    %v1573 = vsel %vm80, %v1546, 0
    %1575 = vmatprep.subr.bf16.mxu0 0
    %1576 = vmatpush1.bf16.msra.mxu0 %v1568
    %1577 = vmatprep.subr.bf16.mxu0 0
    %1578 = vmatpush1.bf16.msra.mxu0 %v1569
    %1579 = vmatprep.subr.bf16.mxu0 0
    %1580 = vmatpush1.bf16.msra.mxu0 0
    %1581 = vmatprep.subr.bf16.mxu0 0
    %1582 = vmatpush1.bf16.msra.mxu0 0
    %1583 = vmatprep.subr.bf16.mxu0 0
    %1584 = vmatpush1.bf16.msra.mxu0 0
    %1585 = vmatprep.subr.bf16.mxu0 0
    %1586 = vmatpush1.bf16.msra.mxu0 0
    %1587 = vmatprep.subr.bf16.mxu0 0
    %1588 = vmatpush1.bf16.msra.mxu0 0
    %1589 = vmatprep.subr.bf16.mxu0 0
    %1590 = vmatpush1.bf16.msra.mxu0 0
    %1591 = vmatprep.subr.bf16.mxu0 0
    %1592 = vmatpush1.bf16.msra.mxu0 0
    %1593 = vmatprep.subr.bf16.mxu0 0
    %1594 = vmatpush1.bf16.msra.mxu0 0
    %1595 = vmatprep.subr.bf16.mxu0 0
    %1596 = vmatpush1.bf16.msra.mxu0 0
    %1597 = vmatprep.subr.bf16.mxu0 0
    %1598 = vmatpush1.bf16.msra.mxu0 0
    %1599 = vmatprep.subr.bf16.mxu0 0
    %1600 = vmatpush1.bf16.msra.mxu0 0
    %1601 = vmatprep.subr.bf16.mxu0 0
    %1602 = vmatpush1.bf16.msra.mxu0 0
    %1603 = vmatprep.subr.bf16.mxu0 0
    %1604 = vmatpush1.bf16.msra.mxu0 0
    %1605 = vmatprep.subr.bf16.mxu0 0
    %1606 = vmatpush1.bf16.msra.mxu0 0
    %1607 = vmatprep.mubr.bf16.mxu0 0
    %1608 = vmatmul.mubr.bf16.gmra.mrb[0].mxu0 %v1573
    %v1609 = vpop.f32.mrb[0].mxu0
    %v1610 = vadd.f32 %v1558, %v1609
    %v1611 = vpop.f32.mrb[0].mxu0
    %v1612 = vpop.f32.mrb[0].mxu0
    %v1613 = vadd.f32 %v1558, %v1612
    %v1614 = vpop.f32.mrb[0].mxu0
    %1615 = vdwg.mxu0
    %v1616 = vadd.f32 %v1016, %v1610
    %v1617 = vadd.f32 %v1017, %v1613
    %s1618 = scalar_lea.vmem %s8, 1
    %v1619 = vld [vmem:[%s1618] sm:$0x1]
    %s1620 = scalar_lea.vmem %s9, 1
    %v1621 = vld [vmem:[%s1620] sm:$0x1]
    %v1622 = vsel %vm80, %v1616, 0.0
    %1623 = vadd.xlane.f32.xlu0 %v1622
    %v1624 = vpop.xlane.xlu0 %1623
    %v1625 = vsel %vm80, %v1617, 0.0
    %1626 = vadd.xlane.f32.xlu0 %v1625
    %v1627 = vpop.xlane.xlu0 %1626
    %v1628 = vmul.f32 %v1624, %v87
    %v1629 = vmul.f32 %v1627, %v87
    %v1630 = vsub.f32 %v1616, %v1628
    %v1631 = vsub.f32 %v1617, %v1629
    %v1632 = vmul.f32 %v1630, %v1630
    %v1633 = vmul.f32 %v1631, %v1631
    %v1634 = vsel %vm80, %v1632, 0.0
    %1635 = vadd.xlane.f32.xlu0 %v1634
    %v1636 = vpop.xlane.xlu0 %1635
    %v1637 = vsel %vm80, %v1633, 0.0
    %1638 = vadd.xlane.f32.xlu0 %v1637
    %v1639 = vpop.xlane.xlu0 %1638
    %v1640 = vmul.f32 %v1636, %v87
    %v1641 = vmul.f32 %v1639, %v87
    %v1642 = vadd.f32 %v1640, 1e-12
    %v1643 = vadd.f32 %v1641, 1e-12
    %v1644 = vrsqrt.pop %v1642
    %v1645 = vrsqrt.pop %v1643
    %v1646 = vmul.f32 %v1630, %v1644
    %v1647 = vmul.f32 %v1631, %v1645
    %v1649 = vlaneseq
    %v1650 = vshrl.u32 %v1649, 7
    %v1651 = vsub.s32 0, %v1650
    %v1652 = vrot.slane %v1619, %v1651
    %v1654 = vmul.f32 %v1646, %v1652
    %v1655 = vmul.f32 %v1647, %v1652
    %v1657 = vlaneseq
    %v1658 = vshrl.u32 %v1657, 7
    %v1659 = vsub.s32 0, %v1658
    %v1660 = vrot.slane %v1621, %v1659
    %v1662 = vadd.f32 %v1654, %v1660
    %v1663 = vadd.f32 %v1655, %v1660
    %v1664 = vpack.c.bf16 %v1663, %v1662
    %s1665 = scalar_lea.vmem %s10, 16
    %v1666 = vld [vmem:[%s1665] sm:$0xf]
    %v1667 = vld [vmem:[%s1665 + $0x4] sm:$0xf]
    %v1668 = vld [vmem:[%s1665 + $0x8] sm:$0xf]
    %v1669 = vld [vmem:[%s1665 + $0xc] sm:$0xf]
    %s1670 = scalar_lea.vmem %s11, 1
    %v1671 = vld [vmem:[%s1670] sm:$0x1]
    %v1673 = vlaneseq
    %v1674 = vshrl.u32 %v1673, 7
    %v1675 = vsub.s32 0, %v1674
    %v1676 = vrot.slane %v1671, %v1675
    %v1682 = vunpack.c.l.b16 %v1666
    %v1683 = vunpack.c.l.b16 %v1667
    %v1684 = vunpack.c.l.b16 %v1668
    %v1685 = vunpack.c.l.b16 %v1669
    %v1686 = vpack.c.b16 %v1683, %v1682
    %v1687 = vpack.c.b16 %v1685, %v1684
    %v1691 = vsel %vm80, %v1664, 0
    %1693 = vmatprep.subr.bf16.mxu0 0
    %1694 = vmatpush1.bf16.msra.mxu0 %v1686
    %1695 = vmatprep.subr.bf16.mxu0 0
    %1696 = vmatpush1.bf16.msra.mxu0 %v1687
    %1697 = vmatprep.subr.bf16.mxu0 0
    %1698 = vmatpush1.bf16.msra.mxu0 0
    %1699 = vmatprep.subr.bf16.mxu0 0
    %1700 = vmatpush1.bf16.msra.mxu0 0
    %1701 = vmatprep.subr.bf16.mxu0 0
    %1702 = vmatpush1.bf16.msra.mxu0 0
    %1703 = vmatprep.subr.bf16.mxu0 0
    %1704 = vmatpush1.bf16.msra.mxu0 0
    %1705 = vmatprep.subr.bf16.mxu0 0
    %1706 = vmatpush1.bf16.msra.mxu0 0
    %1707 = vmatprep.subr.bf16.mxu0 0
    %1708 = vmatpush1.bf16.msra.mxu0 0
    %1709 = vmatprep.subr.bf16.mxu0 0
    %1710 = vmatpush1.bf16.msra.mxu0 0
    %1711 = vmatprep.subr.bf16.mxu0 0
    %1712 = vmatpush1.bf16.msra.mxu0 0
    %1713 = vmatprep.subr.bf16.mxu0 0
    %1714 = vmatpush1.bf16.msra.mxu0 0
    %1715 = vmatprep.subr.bf16.mxu0 0
    %1716 = vmatpush1.bf16.msra.mxu0 0
    %1717 = vmatprep.subr.bf16.mxu0 0
    %1718 = vmatpush1.bf16.msra.mxu0 0
    %1719 = vmatprep.subr.bf16.mxu0 0
    %1720 = vmatpush1.bf16.msra.mxu0 0
    %1721 = vmatprep.subr.bf16.mxu0 0
    %1722 = vmatpush1.bf16.msra.mxu0 0
    %1723 = vmatprep.subr.bf16.mxu0 0
    %1724 = vmatpush1.bf16.msra.mxu0 0
    %1725 = vmatprep.mubr.bf16.mxu0 0
    %1726 = vmatmul.mubr.bf16.gmra.mrb[0].mxu0 %v1691
    %v1727 = vpop.f32.mrb[0].mxu0
    %v1728 = vadd.f32 %v1676, %v1727
    %v1729 = vpop.f32.mrb[0].mxu0
    %v1730 = vpop.f32.mrb[0].mxu0
    %v1731 = vadd.f32 %v1676, %v1730
    %v1732 = vpop.f32.mrb[0].mxu0
    %1733 = vdwg.mxu0
    %v1734 = vmul.f32 %v1728, 0.5
    %v1735 = vmul.f32 %v1731, 0.5
    %v1736 = vmul.f32 %v1728, 0.044715
    %v1737 = vmul.f32 %v1731, 0.044715
    %v1738 = vmul.f32 %v1736, %v1728
    %v1739 = vmul.f32 %v1737, %v1731
    %v1740 = vmul.f32 %v1738, %v1728
    %v1741 = vmul.f32 %v1739, %v1731
    %v1742 = vadd.f32 %v1728, %v1740
    %v1743 = vadd.f32 %v1731, %v1741
    %v1744 = vmul.f32 %v1742, 0.7978846
    %v1745 = vmul.f32 %v1743, 0.7978846
    %v1746 = vtanh.pop %v1744
    %v1747 = vtanh.pop %v1745
    %v1748 = vadd.f32 %v1746, 1.0
    %v1749 = vadd.f32 %v1747, 1.0
    %v1750 = vmul.f32 %v1734, %v1748
    %v1751 = vmul.f32 %v1735, %v1749
    %v1752 = vpack.c.bf16 %v1751, %v1750
    %s1753 = scalar_lea.vmem %s12, 32
    %v1754 = vld [vmem:[%s1753] sm:$0xf]
    %v1755 = vld [vmem:[%s1753 + $0x4] sm:$0xf]
    %v1756 = vld [vmem:[%s1753 + $0x8] sm:$0xf]
    %v1757 = vld [vmem:[%s1753 + $0xc] sm:$0xf]
    %v1758 = vld [vmem:[%s1753 + $0x10] sm:$0xf]
    %v1759 = vld [vmem:[%s1753 + $0x14] sm:$0xf]
    %v1760 = vld [vmem:[%s1753 + $0x18] sm:$0xf]
    %v1761 = vld [vmem:[%s1753 + $0x1c] sm:$0xf]
    %s1762 = scalar_lea.vmem %s13, 1
    %v1763 = vld [vmem:[%s1762] sm:$0x1]
    %v1765 = vlaneseq
    %v1766 = vshrl.u32 %v1765, 7
    %v1767 = vsub.s32 0, %v1766
    %v1768 = vrot.slane %v1763, %v1767
    %v1778 = vunpack.c.l.b16 %v1754
    %v1779 = vunpack.c.l.b16 %v1755
    %v1780 = vunpack.c.l.b16 %v1756
    %v1781 = vunpack.c.l.b16 %v1757
    %v1782 = vunpack.c.l.b16 %v1758
    %v1783 = vunpack.c.l.b16 %v1759
    %v1784 = vunpack.c.l.b16 %v1760
    %v1785 = vunpack.c.l.b16 %v1761
    %v1786 = vpack.c.b16 %v1779, %v1778
    %v1787 = vpack.c.b16 %v1781, %v1780
    %v1788 = vpack.c.b16 %v1783, %v1782
    %v1789 = vpack.c.b16 %v1785, %v1784
    %v1795 = vsel %vm927, %v1752, 0
    %1797 = vmatprep.subr.bf16.mxu0 0
    %1798 = vmatpush1.bf16.msra.mxu0 %v1786
    %1799 = vmatprep.subr.bf16.mxu0 0
    %1800 = vmatpush1.bf16.msra.mxu0 %v1787
    %1801 = vmatprep.subr.bf16.mxu0 0
    %1802 = vmatpush1.bf16.msra.mxu0 %v1788
    %1803 = vmatprep.subr.bf16.mxu0 0
    %1804 = vmatpush1.bf16.msra.mxu0 %v1789
    %1805 = vmatprep.subr.bf16.mxu0 0
    %1806 = vmatpush1.bf16.msra.mxu0 0
    %1807 = vmatprep.subr.bf16.mxu0 0
    %1808 = vmatpush1.bf16.msra.mxu0 0
    %1809 = vmatprep.subr.bf16.mxu0 0
    %1810 = vmatpush1.bf16.msra.mxu0 0
    %1811 = vmatprep.subr.bf16.mxu0 0
    %1812 = vmatpush1.bf16.msra.mxu0 0
    %1813 = vmatprep.subr.bf16.mxu0 0
    %1814 = vmatpush1.bf16.msra.mxu0 0
    %1815 = vmatprep.subr.bf16.mxu0 0
    %1816 = vmatpush1.bf16.msra.mxu0 0
    %1817 = vmatprep.subr.bf16.mxu0 0
    %1818 = vmatpush1.bf16.msra.mxu0 0
    %1819 = vmatprep.subr.bf16.mxu0 0
    %1820 = vmatpush1.bf16.msra.mxu0 0
    %1821 = vmatprep.subr.bf16.mxu0 0
    %1822 = vmatpush1.bf16.msra.mxu0 0
    %1823 = vmatprep.subr.bf16.mxu0 0
    %1824 = vmatpush1.bf16.msra.mxu0 0
    %1825 = vmatprep.subr.bf16.mxu0 0
    %1826 = vmatpush1.bf16.msra.mxu0 0
    %1827 = vmatprep.subr.bf16.mxu0 0
    %1828 = vmatpush1.bf16.msra.mxu0 0
    %1829 = vmatprep.mubr.bf16.mxu0 0
    %1830 = vmatmul.mubr.bf16.gmra.mrb[0].mxu0 %v1795
    %v1831 = vpop.f32.mrb[0].mxu0
    %v1832 = vadd.f32 %v1768, %v1831
    %v1833 = vpop.f32.mrb[0].mxu0
    %v1834 = vpop.f32.mrb[0].mxu0
    %v1835 = vadd.f32 %v1768, %v1834
    %v1836 = vpop.f32.mrb[0].mxu0
    %1837 = vdwg.mxu0
    %v1838 = vadd.f32 %v1662, %v1832
    %v1839 = vadd.f32 %v1663, %v1835
    %s1840 = scalar_lea.vmem %s14, 1
    %v1841 = vld [vmem:[%s1840] sm:$0x1]
    %s1842 = scalar_lea.vmem %s15, 1
    %v1843 = vld [vmem:[%s1842] sm:$0x1]
    %v1844 = vsel %vm80, %v1838, 0.0
    %1845 = vadd.xlane.f32.xlu0 %v1844
    %v1846 = vpop.xlane.xlu0 %1845
    %v1847 = vsel %vm80, %v1839, 0.0
    %1848 = vadd.xlane.f32.xlu0 %v1847
    %v1849 = vpop.xlane.xlu0 %1848
    %v1850 = vmul.f32 %v1846, %v87
    %v1851 = vmul.f32 %v1849, %v87
    %v1852 = vsub.f32 %v1838, %v1850
    %v1853 = vsub.f32 %v1839, %v1851
    %v1854 = vmul.f32 %v1852, %v1852
    %v1855 = vmul.f32 %v1853, %v1853
    %v1856 = vsel %vm80, %v1854, 0.0
    %1857 = vadd.xlane.f32.xlu0 %v1856
    %v1858 = vpop.xlane.xlu0 %1857
    %v1859 = vsel %vm80, %v1855, 0.0
    %1860 = vadd.xlane.f32.xlu0 %v1859
    %v1861 = vpop.xlane.xlu0 %1860
    %v1862 = vmul.f32 %v1858, %v87
    %v1863 = vmul.f32 %v1861, %v87
    %v1864 = vadd.f32 %v1862, 1e-12
    %v1865 = vadd.f32 %v1863, 1e-12
    %v1866 = vrsqrt.pop %v1864
    %v1867 = vrsqrt.pop %v1865
    %v1868 = vmul.f32 %v1852, %v1866
    %v1869 = vmul.f32 %v1853, %v1867
    %v1871 = vlaneseq
    %v1872 = vshrl.u32 %v1871, 7
    %v1873 = vsub.s32 0, %v1872
    %v1874 = vrot.slane %v1841, %v1873
    %v1876 = vmul.f32 %v1868, %v1874
    %v1877 = vmul.f32 %v1869, %v1874
    %v1879 = vlaneseq
    %v1880 = vshrl.u32 %v1879, 7
    %v1881 = vsub.s32 0, %v1880
    %v1882 = vrot.slane %v1843, %v1881
    %v1884 = vadd.f32 %v1876, %v1882
    %v1885 = vadd.f32 %v1877, %v1882
    %v1886 = vpack.c.bf16 %v1884, %v1884
    %v1887 = vpack.c.bf16 %v1885, %v1885
    %v1888 = vld [vmem:[%s16] sm:$0xf]
    %v1889 = vld [vmem:[%s16 + $0x4] sm:$0xf]
    %v1890 = vld [vmem:[%s16 + $0x8] sm:$0xf]
    %v1891 = vld [vmem:[%s16 + $0xc] sm:$0xf]
    %v1892 = vld [vmem:[%s17] sm:$0x1]
    %v1894 = vlaneseq
    %v1895 = vshrl.u32 %v1894, 7
    %v1896 = vsub.s32 0, %v1895
    %v1897 = vrot.slane %v1892, %v1896
    %v1901 = vunpack.c.l.b16 %v1886
    %v1902 = vunpack.c.l.b16 %v1887
    %v1903 = vrot.slane %v1902, 7
    %vm1904 = vcmask 1041409
    %v1905 = vsel %vm1904, %v1903, %v1901
    %v1906 = vpack.c.b16 %v1905, %v1905
    %v1911 = vunpack.c.l.b16 %v1888
    %v1912 = vunpack.c.l.b16 %v1889
    %v1913 = vunpack.c.l.b16 %v1890
    %v1914 = vunpack.c.l.b16 %v1891
    %v1915 = vpack.c.b16 %v1912, %v1911
    %v1916 = vpack.c.b16 %v1914, %v1913
    %v1920 = vsel %vm80, %v1906, 0
    %1922 = vmatprep.subr.bf16.mxu0 0
    %1923 = vmatpush1.bf16.msra.mxu0 %v1915
    %1924 = vmatprep.subr.bf16.mxu0 0
    %1925 = vmatpush1.bf16.msra.mxu0 %v1916
    %1926 = vmatprep.subr.bf16.mxu0 0
    %1927 = vmatpush1.bf16.msra.mxu0 0
    %1928 = vmatprep.subr.bf16.mxu0 0
    %1929 = vmatpush1.bf16.msra.mxu0 0
    %1930 = vmatprep.subr.bf16.mxu0 0
    %1931 = vmatpush1.bf16.msra.mxu0 0
    %1932 = vmatprep.subr.bf16.mxu0 0
    %1933 = vmatpush1.bf16.msra.mxu0 0
    %1934 = vmatprep.subr.bf16.mxu0 0
    %1935 = vmatpush1.bf16.msra.mxu0 0
    %1936 = vmatprep.subr.bf16.mxu0 0
    %1937 = vmatpush1.bf16.msra.mxu0 0
    %1938 = vmatprep.subr.bf16.mxu0 0
    %1939 = vmatpush1.bf16.msra.mxu0 0
    %1940 = vmatprep.subr.bf16.mxu0 0
    %1941 = vmatpush1.bf16.msra.mxu0 0
    %1942 = vmatprep.subr.bf16.mxu0 0
    %1943 = vmatpush1.bf16.msra.mxu0 0
    %1944 = vmatprep.subr.bf16.mxu0 0
    %1945 = vmatpush1.bf16.msra.mxu0 0
    %1946 = vmatprep.subr.bf16.mxu0 0
    %1947 = vmatpush1.bf16.msra.mxu0 0
    %1948 = vmatprep.subr.bf16.mxu0 0
    %1949 = vmatpush1.bf16.msra.mxu0 0
    %1950 = vmatprep.subr.bf16.mxu0 0
    %1951 = vmatpush1.bf16.msra.mxu0 0
    %1952 = vmatprep.subr.bf16.mxu0 0
    %1953 = vmatpush1.bf16.msra.mxu0 0
    %1954 = vmatprep.mubr.bf16.mxu0 0
    %1955 = vmatmul.mubr.bf16.gmra.mrb[0].mxu0 %v1920
    %v1956 = vpop.f32.mrb[0].mxu0
    %v1957 = vadd.f32 %v1897, %v1956
    %v1958 = vpop.f32.mrb[0].mxu0
    %v1959 = vpop.f32.mrb[0].mxu0
    %v1960 = vpop.f32.mrb[0].mxu0
    %1961 = vdwg.mxu0
    %v1962 = vtanh.pop %v1957
    %v1963 = vpack.c.bf16 %v1962, %v1962
    %v1964 = vld [vmem:[%s18] sm:$0xf]
    %v1965 = vld [vmem:[%s18 + $0x4] sm:$0xf]
    %v1966 = vld [vmem:[%s18 + $0x8] sm:$0xf]
    %v1967 = vld [vmem:[%s18 + $0xc] sm:$0xf]
    %v1968 = vld [vmem:[%s19] sm:$0x1]
    %v1970 = vlaneseq
    %v1971 = vshrl.u32 %v1970, 7
    %v1972 = vsub.s32 0, %v1971
    %v1973 = vrot.slane %v1968, %v1972
    %v1979 = vunpack.c.l.b16 %v1964
    %v1980 = vunpack.c.l.b16 %v1965
    %v1981 = vunpack.c.l.b16 %v1966
    %v1982 = vunpack.c.l.b16 %v1967
    %v1983 = vpack.c.b16 %v1980, %v1979
    %v1984 = vpack.c.b16 %v1982, %v1981
    %v1988 = vsel %vm80, %v1963, 0
    %1990 = vmatprep.subr.bf16.mxu0 0
    %1991 = vmatpush1.bf16.msra.mxu0 %v1983
    %1992 = vmatprep.subr.bf16.mxu0 0
    %1993 = vmatpush1.bf16.msra.mxu0 %v1984
    %1994 = vmatprep.subr.bf16.mxu0 0
    %1995 = vmatpush1.bf16.msra.mxu0 0
    %1996 = vmatprep.subr.bf16.mxu0 0
    %1997 = vmatpush1.bf16.msra.mxu0 0
    %1998 = vmatprep.subr.bf16.mxu0 0
    %1999 = vmatpush1.bf16.msra.mxu0 0
    %2000 = vmatprep.subr.bf16.mxu0 0
    %2001 = vmatpush1.bf16.msra.mxu0 0
    %2002 = vmatprep.subr.bf16.mxu0 0
    %2003 = vmatpush1.bf16.msra.mxu0 0
    %2004 = vmatprep.subr.bf16.mxu0 0
    %2005 = vmatpush1.bf16.msra.mxu0 0
    %2006 = vmatprep.subr.bf16.mxu0 0
    %2007 = vmatpush1.bf16.msra.mxu0 0
    %2008 = vmatprep.subr.bf16.mxu0 0
    %2009 = vmatpush1.bf16.msra.mxu0 0
    %2010 = vmatprep.subr.bf16.mxu0 0
    %2011 = vmatpush1.bf16.msra.mxu0 0
    %2012 = vmatprep.subr.bf16.mxu0 0
    %2013 = vmatpush1.bf16.msra.mxu0 0
    %2014 = vmatprep.subr.bf16.mxu0 0
    %2015 = vmatpush1.bf16.msra.mxu0 0
    %2016 = vmatprep.subr.bf16.mxu0 0
    %2017 = vmatpush1.bf16.msra.mxu0 0
    %2018 = vmatprep.subr.bf16.mxu0 0
    %2019 = vmatpush1.bf16.msra.mxu0 0
    %2020 = vmatprep.subr.bf16.mxu0 0
    %2021 = vmatpush1.bf16.msra.mxu0 0
    %2022 = vmatprep.mubr.bf16.mxu0 0
    %2023 = vmatmul.mubr.bf16.gmra.mrb[0].mxu0 %v1988
    %v2024 = vpop.f32.mrb[0].mxu0
    %v2025 = vadd.f32 %v1973, %v2024
    %v2026 = vpop.f32.mrb[0].mxu0
    %v2027 = vpop.f32.mrb[0].mxu0
    %v2028 = vpop.f32.mrb[0].mxu0
    %2029 = vdwg.mxu0
    %2030 = vst [vmem:[#allocation2] sm:$0x3] %v2025
    %v2031 = vld [vmem:[%s20] sm:$0x3]
    %v2032 = vld [vmem:[%s21] sm:$0x1]
    %v2033 = vsub.f32 0.0, %v2025
    %v2034 = vmax.f32 %v2033, 0.0
    %v2035 = vand.u32 2147483647, %v2025
    %v2036 = vsub.f32 0.0, %v2035
    %v2037 = vmul.f32 %v2036, 1.442695
    %v2038 = vpow.pop %v2037
    %v2039 = vadd.f32 %v2038, 1.0
    %v2040 = vlog2.pop %v2039
    %v2041 = vmul.f32 %v2040, 0.6931472
    %v2042 = vadd.f32 %v2034, %v2041
    %v2043 = vsub.f32 1.0, %v2031
    %v2044 = vmul.f32 %v2043, %v2025
    %v2046 = vlaneseq
    %v2047 = vshrl.u32 %v2046, 7
    %v2048 = vsub.s32 0, %v2047
    %v2049 = vrot.slane %v2032, %v2048
    %v2051 = vmul.f32 %v2049, %v2031
    %v2052 = vadd.f32 %v2051, 1.0
    %v2053 = vsub.f32 %v2052, %v2031
    %v2054 = vmul.f32 %v2053, %v2042
    %v2055 = vadd.f32 %v2044, %v2054
    %vm2056 = vcmask 9216
    %v2057 = vsel %vm2056, %v2055, 0.0
    %2058 = vadd.xlane.f32.xlu0 %v2057
    %v2059 = vpop.xlane.xlu0 %2058
    %v2060 = vrot.slane %v2059, 4
    %v2061 = vadd.f32 %v2059, %v2060
    %v2062 = vrot.slane %v2061, 2
    %v2063 = vadd.f32 %v2061, %v2062
    %v2064 = vrot.slane %v2063, 1
    %v2065 = vadd.f32 %v2063, %v2064
    %s2066 = vtos %v2065
    %v2067 = vstv %s2066
    %v2068 = vrcp.pop 4.0
    %v2069 = vmul.f32 %v2067, %v2068
    %vm2070 = vcmask 0
    %2071 = vst.msk [vmem:[#allocation4] sm:$0x1] %vm2070, %v2069
    // Predicated region
    $region90: #{_forward_jit.1} parent=1 // pred_check
      _
    $region91: #{_forward_jit.1} parent=1 // pred_check_branch
      %2073 = sbr.rel (0) target = $region93
    $region92: #{_forward_jit.1} parent=1 // pred_region
      %s2075 = ssub.s32 32, 32
      %2076 = vsyncadd [#allocation3], %s2075
      %s2078 = sshll.u32 [#allocation2], 4
      %s2079 = int_to_ptr.vmem [resolvable:$true] %s2078
      %2081 = dma.vmem_to_hbm [thread:$0]  %s2079, 32, %s22, [#allocation3]
    $region93: #{_forward_jit.1} parent=1 // pred_fallthru
      _
    // Predicated region
    $region94: #{_forward_jit.1} parent=1 // pred_check
      _
    $region95: #{_forward_jit.1} parent=1 // pred_check_branch
      %2083 = sbr.rel (0) target = $region97
    $region96: #{_forward_jit.1} parent=1 // pred_region
      %s2085 = ssub.s32 16, 16
      %2086 = vsyncadd [#allocation5], %s2085
      %s2088 = sshll.u32 [#allocation4], 4
      %s2089 = int_to_ptr.vmem [resolvable:$true] %s2088
      %2091 = dma.vmem_to_hbm [thread:$0]  %s2089, 16, %s23, [#allocation5]
    $region97: #{_forward_jit.1} parent=1 // pred_fallthru
      _
    // Predicated region
    $region98: #{_forward_jit.1} parent=1 // pred_check
      _
    $region99: #{_forward_jit.1} parent=1 // pred_check_branch
      %2093 = sbr.rel (0) target = $region101
    $region100: #{_forward_jit.1} parent=1 // pred_region
      %2094 = dma.done [#allocation3], 32
    $region101: #{_forward_jit.1} parent=1 // pred_fallthru
      _
    // Predicated region
    $region102: #{_forward_jit.1} parent=1 // pred_check
      _
    $region103: #{_forward_jit.1} parent=1 // pred_check_branch
      %2096 = sbr.rel (0) target = $region105
    $region104: #{_forward_jit.1} parent=1 // pred_region
      %2097 = dma.done [#allocation5], 16
    $region105: #{_forward_jit.1} parent=1 // pred_fallthru
      _
    %2098 = vsyncpa [#allocation3], 1
    %2099 = vsyncpa [#allocation5], 1

</llo_original>
